<compile_context>
chip_gen: v6e
topology: v6e:2x2x1
jax: 0.10.0
libtpu: 0.0.40
codegen_flags: <defaults>
</compile_context>

<pallas_src>
import math

import jax
import jax.numpy as jnp
from jax.experimental import pallas as pl
from jax.experimental.pallas import tpu as pltpu


def _round_up(n: int, m: int) -> int:
    return ((n + m - 1) // m) * m


def fmpe_kernel(theta_ref, x_ref, t_ref, freqs_ref,
                w1t_ref, w1x_ref, w1c_ref, w1s_ref, b1_ref,
                w2_ref, b2_ref, w3_ref, b3_ref, out_ref):
    # Time embedding: tf = freqs * t  -> cos / sin, computed on VPU/EUP.
    tf = t_ref[...] * freqs_ref[...]                                 # (TN, F)

    # Layer 1: exploit linearity -- sum of per-group matmuls replaces the
    # concat(theta, x, cos, sin) @ W1 of the reference (no feature tensor,
    # no in-kernel lane concatenation).
    h = jnp.dot(theta_ref[...], w1t_ref[...],
                preferred_element_type=jnp.float32)
    h = h + jnp.dot(x_ref[...], w1x_ref[...],
                    preferred_element_type=jnp.float32)
    h = h + jnp.dot(jnp.cos(tf), w1c_ref[...],
                    preferred_element_type=jnp.float32)
    h = h + jnp.dot(jnp.sin(tf), w1s_ref[...],
                    preferred_element_type=jnp.float32)
    h = jnp.maximum(h + b1_ref[...], 0.0)                            # ReLU

    # Layer 2 (hidden x hidden) -- single large-M MXU matmul.
    h = jnp.dot(h, w2_ref[...], preferred_element_type=jnp.float32)
    h = jnp.maximum(h + b2_ref[...], 0.0)                            # ReLU

    # Output layer: vector field v_phi(theta, x, t), width D.
    out = jnp.dot(h, w3_ref[...], preferred_element_type=jnp.float32)
    out_ref[...] = (out + b3_ref[...]).astype(out_ref.dtype)


def fmpe_forward(theta, x, t, params, freqs, *, tile_n: int = 256):
    """FMPE.forward(theta, x, t) -> v_phi(theta, x, t), shape (N, D)."""
    theta = jnp.asarray(theta, jnp.float32)
    x = jnp.asarray(x, jnp.float32)
    t = jnp.asarray(t, jnp.float32)
    w1, b1, w2, b2, w3, b3 = params

    N, D = theta.shape
    _, L = x.shape
    F = len(freqs)
    H1 = w1.shape[1]
    H2 = w2.shape[1]
    assert w1.shape[0] == D + L + 2 * F

    # Split W1 by input group (matches torch.cat((theta, x, cos, sin)) order).
    w1t = w1[:D]
    w1x = w1[D:D + L]
    w1c = w1[D + L:D + L + F]
    w1s = w1[D + L + F:]
    b1 = b1.reshape(1, H1)
    b2 = b2.reshape(1, H2)
    b3 = b3.reshape(1, D)
    freqs_row = jnp.asarray(freqs, jnp.float32).reshape(1, F)

    # Tile the batch axis (multiple of 8 sublanes); zero-pad N if needed.
    TN = min(int(tile_n), _round_up(N, 8))
    TN = _round_up(TN, 8)
    Np = _round_up(N, TN)
    pad = Np - N
    if pad:
        theta = jnp.pad(theta, ((0, pad), (0, 0)))
        x = jnp.pad(x, ((0, pad), (0, 0)))
        t = jnp.pad(t, ((0, pad),))
    t2d = t.reshape(Np, 1)

    def row_spec(cols):
        return pl.BlockSpec((TN, cols), lambda i: (i, 0))

    def resident(shape):
        # Constant block index -> weight stays resident in VMEM across tiles.
        return pl.BlockSpec(shape, lambda i: (0, 0))

    out = pl.pallas_call(
        fmpe_kernel,
        out_shape=jax.ShapeDtypeStruct((Np, D), jnp.float32),
        grid_spec=pltpu.PrefetchScalarGridSpec(
            num_scalar_prefetch=0,
            grid=(Np // TN,),
            in_specs=[
                row_spec(D),            # theta tile
                row_spec(L),            # x tile
                row_spec(1),            # t tile (column)
                resident((1, F)),       # freqs row-vector (passed, not captured)
                resident((D, H1)),      # W1[theta rows]
                resident((L, H1)),      # W1[x rows]
                resident((F, H1)),      # W1[cos rows]
                resident((F, H1)),      # W1[sin rows]
                resident((1, H1)),      # b1
                resident((H1, H2)),     # W2
                resident((1, H2)),      # b2
                resident((H2, D)),      # W3
                resident((1, D)),       # b3
            ],
            out_specs=row_spec(D),
        ),
        compiler_params=pltpu.CompilerParams(
            dimension_semantics=("parallel",),   # independent tiles -> megacore on v7x
            vmem_limit_bytes=32 * 1024 * 1024,   # safe on v5e/v6e/v7x
        ),
    )(theta, x, t2d, freqs_row, w1t, w1x, w1c, w1s, b1, w2, b2, w3, b3)

    return out[:N]


def fmpe_forward_ref(theta, x, t, params, freqs):
    """Pure-JAX reference mirroring the PyTorch forward."""
    w1, b1, w2, b2, w3, b3 = params
    freqs = jnp.asarray(freqs, jnp.float32)
    tf = t[..., None] * freqs
    temb = jnp.concatenate([jnp.cos(tf), jnp.sin(tf)], axis=-1)
    feat = jnp.concatenate([theta, x, temb], axis=-1)
    h = jnp.maximum(feat @ w1 + b1.reshape(1, -1), 0.0)
    h = jnp.maximum(h @ w2 + b2.reshape(1, -1), 0.0)
    return h @ w3 + b3.reshape(1, -1)


if __name__ == "__main__":
    # Small shapes consistent with forward(theta: (N, D), x: (N, L), t: (N,)).
    N, D, L, F, H = 50, 3, 5, 3, 64
    Din = D + L + 2 * F
    freqs = tuple((i + 1) * math.pi for i in range(F))   # register_buffer('freqs')

    key = jax.random.PRNGKey(0)
    ks = jax.random.split(key, 9)
    theta = jax.random.normal(ks[0], (N, D), dtype=jnp.float32)
    x = jax.random.normal(ks[1], (N, L), dtype=jnp.float32)
    t = jax.random.uniform(ks[2], (N,), dtype=jnp.float32)

    # Deterministic synthetic MLP parameters (2 hidden layers, ReLU).
    w1 = 0.2 * jax.random.normal(ks[3], (Din, H), dtype=jnp.float32)
    b1 = 0.1 * jax.random.normal(ks[4], (H,), dtype=jnp.float32)
    w2 = 0.2 * jax.random.normal(ks[5], (H, H), dtype=jnp.float32)
    b2 = 0.1 * jax.random.normal(ks[6], (H,), dtype=jnp.float32)
    w3 = 0.2 * jax.random.normal(ks[7], (H, D), dtype=jnp.float32)
    b3 = 0.1 * jax.random.normal(ks[8], (D,), dtype=jnp.float32)
    params = (w1, b1, w2, b2, w3, b3)

    # tile_n=16 so the demo exercises a multi-step grid plus row padding.
    out = fmpe_forward(theta, x, t, params, freqs, tile_n=16)
    out = jax.block_until_ready(out)

    ref = fmpe_forward_ref(theta, x, t, params, freqs)
    assert out.shape == (N, D), out.shape
    assert jnp.allclose(out, ref, rtol=1e-4, atol=1e-4), (out, ref)

    # TODO(synk): FMPE.flow() (continuous normalizing-flow Distribution / ODE
    # solve) has no Pallas equivalent; only the vector-field forward is kernelized.
    print("KERNEL_OK")
</pallas_src>

<mosaic_0001>
module attributes {stable_mosaic.version = 11 : i64} {
  func.func @fmpe_kernel(%arg0: i32, %arg1: memref<16x3xf32, #tpu.memory_space<vmem>>, %arg2: memref<16x5xf32, #tpu.memory_space<vmem>>, %arg3: memref<16x1xf32, #tpu.memory_space<vmem>>, %arg4: memref<1x3xf32, #tpu.memory_space<vmem>>, %arg5: memref<3x64xf32, #tpu.memory_space<vmem>>, %arg6: memref<5x64xf32, #tpu.memory_space<vmem>>, %arg7: memref<3x64xf32, #tpu.memory_space<vmem>>, %arg8: memref<3x64xf32, #tpu.memory_space<vmem>>, %arg9: memref<1x64xf32, #tpu.memory_space<vmem>>, %arg10: memref<64x64xf32, #tpu.memory_space<vmem>>, %arg11: memref<1x64xf32, #tpu.memory_space<vmem>>, %arg12: memref<64x3xf32, #tpu.memory_space<vmem>>, %arg13: memref<1x3xf32, #tpu.memory_space<vmem>>, %arg14: memref<16x3xf32, #tpu.memory_space<vmem>>) attributes {dimension_semantics = [#tpu.dimension_semantics<parallel>], iteration_bounds = array<i64: 4>, scalar_prefetch = 0 : i64, scratch_operands = 0 : i64, tpu.core_type = #tpu.core_type<tc>, window_params = [{transform_indices = @transform_0, window_bounds = array<i64: 16, 3>}, {transform_indices = @transform_1, window_bounds = array<i64: 16, 5>}, {transform_indices = @transform_2, window_bounds = array<i64: 16, 1>}, {pipeline_mode = #tpu.pipeline_mode<synchronous>, transform_indices = @transform_3, window_bounds = array<i64: 1, 3>}, {pipeline_mode = #tpu.pipeline_mode<synchronous>, transform_indices = @transform_4, window_bounds = array<i64: 3, 64>}, {pipeline_mode = #tpu.pipeline_mode<synchronous>, transform_indices = @transform_5, window_bounds = array<i64: 5, 64>}, {pipeline_mode = #tpu.pipeline_mode<synchronous>, transform_indices = @transform_6, window_bounds = array<i64: 3, 64>}, {pipeline_mode = #tpu.pipeline_mode<synchronous>, transform_indices = @transform_7, window_bounds = array<i64: 3, 64>}, {pipeline_mode = #tpu.pipeline_mode<synchronous>, transform_indices = @transform_8, window_bounds = array<i64: 1, 64>}, {pipeline_mode = #tpu.pipeline_mode<synchronous>, transform_indices = @transform_9, window_bounds = array<i64: 64, 64>}, {pipeline_mode = #tpu.pipeline_mode<synchronous>, transform_indices = @transform_10, window_bounds = array<i64: 1, 64>}, {pipeline_mode = #tpu.pipeline_mode<synchronous>, transform_indices = @transform_11, window_bounds = array<i64: 64, 3>}, {pipeline_mode = #tpu.pipeline_mode<synchronous>, transform_indices = @transform_12, window_bounds = array<i64: 1, 3>}, {transform_indices = @transform_13, window_bounds = array<i64: 16, 3>}]} {
    %c0 = arith.constant 0 : index
    %c0_0 = arith.constant 0 : index
    %0 = vector.load %arg3[%c0, %c0_0] : memref<16x1xf32, #tpu.memory_space<vmem>>, vector<16x1xf32>
    %c0_1 = arith.constant 0 : index
    %c0_2 = arith.constant 0 : index
    %1 = vector.load %arg4[%c0_1, %c0_2] : memref<1x3xf32, #tpu.memory_space<vmem>>, vector<1x3xf32>
    %2 = vector.broadcast %0 : vector<16x1xf32> to vector<16x3xf32>
    %3 = vector.broadcast %1 : vector<1x3xf32> to vector<16x3xf32>
    %4 = arith.mulf %2, %3 : vector<16x3xf32>
    %c0_3 = arith.constant 0 : index
    %c0_4 = arith.constant 0 : index
    %5 = vector.load %arg1[%c0_3, %c0_4] : memref<16x3xf32, #tpu.memory_space<vmem>>, vector<16x3xf32>
    %c0_5 = arith.constant 0 : index
    %c0_6 = arith.constant 0 : index
    %6 = vector.load %arg5[%c0_5, %c0_6] : memref<3x64xf32, #tpu.memory_space<vmem>>, vector<3x64xf32>
    %cst = arith.constant dense<0.000000e+00> : vector<16x64xf32>
    %7 = tpu.matmul %5, %6, %cst {dimension_numbers = #tpu.dot_dimension_numbers<[1], [0], [0], [1], [0, 0, 1, 1], [], []>} : vector<16x3xf32>, vector<3x64xf32>, vector<16x64xf32> -> vector<16x64xf32>
    %c0_7 = arith.constant 0 : index
    %c0_8 = arith.constant 0 : index
    %8 = vector.load %arg2[%c0_7, %c0_8] : memref<16x5xf32, #tpu.memory_space<vmem>>, vector<16x5xf32>
    %c0_9 = arith.constant 0 : index
    %c0_10 = arith.constant 0 : index
    %9 = vector.load %arg6[%c0_9, %c0_10] : memref<5x64xf32, #tpu.memory_space<vmem>>, vector<5x64xf32>
    %cst_11 = arith.constant dense<0.000000e+00> : vector<16x64xf32>
    %10 = tpu.matmul %8, %9, %cst_11 {dimension_numbers = #tpu.dot_dimension_numbers<[1], [0], [0], [1], [0, 0, 1, 1], [], []>} : vector<16x5xf32>, vector<5x64xf32>, vector<16x64xf32> -> vector<16x64xf32>
    %11 = arith.addf %7, %10 : vector<16x64xf32>
    %12 = math.cos %4 : vector<16x3xf32>
    %c0_12 = arith.constant 0 : index
    %c0_13 = arith.constant 0 : index
    %13 = vector.load %arg7[%c0_12, %c0_13] : memref<3x64xf32, #tpu.memory_space<vmem>>, vector<3x64xf32>
    %cst_14 = arith.constant dense<0.000000e+00> : vector<16x64xf32>
    %14 = tpu.matmul %12, %13, %cst_14 {dimension_numbers = #tpu.dot_dimension_numbers<[1], [0], [0], [1], [0, 0, 1, 1], [], []>} : vector<16x3xf32>, vector<3x64xf32>, vector<16x64xf32> -> vector<16x64xf32>
    %15 = arith.addf %11, %14 : vector<16x64xf32>
    %16 = math.sin %4 : vector<16x3xf32>
    %c0_15 = arith.constant 0 : index
    %c0_16 = arith.constant 0 : index
    %17 = vector.load %arg8[%c0_15, %c0_16] : memref<3x64xf32, #tpu.memory_space<vmem>>, vector<3x64xf32>
    %cst_17 = arith.constant dense<0.000000e+00> : vector<16x64xf32>
    %18 = tpu.matmul %16, %17, %cst_17 {dimension_numbers = #tpu.dot_dimension_numbers<[1], [0], [0], [1], [0, 0, 1, 1], [], []>} : vector<16x3xf32>, vector<3x64xf32>, vector<16x64xf32> -> vector<16x64xf32>
    %19 = arith.addf %15, %18 : vector<16x64xf32>
    %c0_18 = arith.constant 0 : index
    %c0_19 = arith.constant 0 : index
    %20 = vector.load %arg9[%c0_18, %c0_19] : memref<1x64xf32, #tpu.memory_space<vmem>>, vector<1x64xf32>
    %21 = vector.broadcast %20 : vector<1x64xf32> to vector<16x64xf32>
    %22 = arith.addf %19, %21 : vector<16x64xf32>
    %cst_20 = arith.constant 0.000000e+00 : f32
    %23 = vector.broadcast %cst_20 : f32 to vector<16x64xf32>
    %24 = arith.maximumf %22, %23 : vector<16x64xf32>
    %c0_21 = arith.constant 0 : index
    %c0_22 = arith.constant 0 : index
    %25 = vector.load %arg10[%c0_21, %c0_22] : memref<64x64xf32, #tpu.memory_space<vmem>>, vector<64x64xf32>
    %cst_23 = arith.constant dense<0.000000e+00> : vector<16x64xf32>
    %26 = tpu.matmul %24, %25, %cst_23 {dimension_numbers = #tpu.dot_dimension_numbers<[1], [0], [0], [1], [0, 0, 1, 1], [], []>} : vector<16x64xf32>, vector<64x64xf32>, vector<16x64xf32> -> vector<16x64xf32>
    %c0_24 = arith.constant 0 : index
    %c0_25 = arith.constant 0 : index
    %27 = vector.load %arg11[%c0_24, %c0_25] : memref<1x64xf32, #tpu.memory_space<vmem>>, vector<1x64xf32>
    %28 = vector.broadcast %27 : vector<1x64xf32> to vector<16x64xf32>
    %29 = arith.addf %26, %28 : vector<16x64xf32>
    %cst_26 = arith.constant 0.000000e+00 : f32
    %30 = vector.broadcast %cst_26 : f32 to vector<16x64xf32>
    %31 = arith.maximumf %29, %30 : vector<16x64xf32>
    %c0_27 = arith.constant 0 : index
    %c0_28 = arith.constant 0 : index
    %32 = vector.load %arg12[%c0_27, %c0_28] : memref<64x3xf32, #tpu.memory_space<vmem>>, vector<64x3xf32>
    %cst_29 = arith.constant dense<0.000000e+00> : vector<16x3xf32>
    %33 = tpu.matmul %31, %32, %cst_29 {dimension_numbers = #tpu.dot_dimension_numbers<[1], [0], [0], [1], [0, 0, 1, 1], [], []>} : vector<16x64xf32>, vector<64x3xf32>, vector<16x3xf32> -> vector<16x3xf32>
    %c0_30 = arith.constant 0 : index
    %c0_31 = arith.constant 0 : index
    %34 = vector.load %arg13[%c0_30, %c0_31] : memref<1x3xf32, #tpu.memory_space<vmem>>, vector<1x3xf32>
    %35 = vector.broadcast %34 : vector<1x3xf32> to vector<16x3xf32>
    %36 = arith.addf %33, %35 : vector<16x3xf32>
    %c0_32 = arith.constant 0 : index
    %c0_33 = arith.constant 0 : index
    %37 = vector.load %arg14[%c0_32, %c0_33] : memref<16x3xf32, #tpu.memory_space<vmem>>, vector<16x3xf32>
    tpu.vector_store %arg14[%c0_32, %c0_33], %36 {strides = array<i32>} : memref<16x3xf32, #tpu.memory_space<vmem>>, vector<16x3xf32>,
    return
  }
  func.func @transform_0(%arg0: i32) -> (i32, i32) {
    %c0_i32 = arith.constant 0 : i32
    %c0_i32_0 = arith.constant 0 : i32
    return %arg0, %c0_i32 : i32, i32
  }
  func.func @transform_1(%arg0: i32) -> (i32, i32) {
    %c0_i32 = arith.constant 0 : i32
    %c0_i32_0 = arith.constant 0 : i32
    return %arg0, %c0_i32 : i32, i32
  }
  func.func @transform_2(%arg0: i32) -> (i32, i32) {
    %c0_i32 = arith.constant 0 : i32
    %c0_i32_0 = arith.constant 0 : i32
    return %arg0, %c0_i32 : i32, i32
  }
  func.func @transform_3(%arg0: i32) -> (i32, i32) {
    %c0_i32 = arith.constant 0 : i32
    %c0_i32_0 = arith.constant 0 : i32
    %c0_i32_1 = arith.constant 0 : i32
    return %c0_i32, %c0_i32_0 : i32, i32
  }
  func.func @transform_4(%arg0: i32) -> (i32, i32) {
    %c0_i32 = arith.constant 0 : i32
    %c0_i32_0 = arith.constant 0 : i32
    %c0_i32_1 = arith.constant 0 : i32
    return %c0_i32, %c0_i32_0 : i32, i32
  }
  func.func @transform_5(%arg0: i32) -> (i32, i32) {
    %c0_i32 = arith.constant 0 : i32
    %c0_i32_0 = arith.constant 0 : i32
    %c0_i32_1 = arith.constant 0 : i32
    return %c0_i32, %c0_i32_0 : i32, i32
  }
  func.func @transform_6(%arg0: i32) -> (i32, i32) {
    %c0_i32 = arith.constant 0 : i32
    %c0_i32_0 = arith.constant 0 : i32
    %c0_i32_1 = arith.constant 0 : i32
    return %c0_i32, %c0_i32_0 : i32, i32
  }
  func.func @transform_7(%arg0: i32) -> (i32, i32) {
    %c0_i32 = arith.constant 0 : i32
    %c0_i32_0 = arith.constant 0 : i32
    %c0_i32_1 = arith.constant 0 : i32
    return %c0_i32, %c0_i32_0 : i32, i32
  }
  func.func @transform_8(%arg0: i32) -> (i32, i32) {
    %c0_i32 = arith.constant 0 : i32
    %c0_i32_0 = arith.constant 0 : i32
    %c0_i32_1 = arith.constant 0 : i32
    return %c0_i32, %c0_i32_0 : i32, i32
  }
  func.func @transform_9(%arg0: i32) -> (i32, i32) {
    %c0_i32 = arith.constant 0 : i32
    %c0_i32_0 = arith.constant 0 : i32
    %c0_i32_1 = arith.constant 0 : i32
    return %c0_i32, %c0_i32_0 : i32, i32
  }
  func.func @transform_10(%arg0: i32) -> (i32, i32) {
    %c0_i32 = arith.constant 0 : i32
    %c0_i32_0 = arith.constant 0 : i32
    %c0_i32_1 = arith.constant 0 : i32
    return %c0_i32, %c0_i32_0 : i32, i32
  }
  func.func @transform_11(%arg0: i32) -> (i32, i32) {
    %c0_i32 = arith.constant 0 : i32
    %c0_i32_0 = arith.constant 0 : i32
    %c0_i32_1 = arith.constant 0 : i32
    return %c0_i32, %c0_i32_0 : i32, i32
  }
  func.func @transform_12(%arg0: i32) -> (i32, i32) {
    %c0_i32 = arith.constant 0 : i32
    %c0_i32_0 = arith.constant 0 : i32
    %c0_i32_1 = arith.constant 0 : i32
    return %c0_i32, %c0_i32_0 : i32, i32
  }
  func.func @transform_13(%arg0: i32) -> (i32, i32) {
    %c0_i32 = arith.constant 0 : i32
    %c0_i32_0 = arith.constant 0 : i32
    return %arg0, %c0_i32 : i32, i32
  }
}

</mosaic_0001>

<llo_original>
// kernel: tpu_custom_call.1
$region0: #{tpu_custom_call.1}
  #allocation0 [shape = 'u32[]', space=smem, size = 0x4, offset = 0x4, fixed_abs, tag = 'smem constant byte address 0x4 - core index']
  #allocation1 [shape = 'u32[144,128]{1,0:T(1,128)}', space=vmem, size = 0x12000, scoped, tag = 'internal scratch']
  %s0 = inlined_call_operand.vmem [shape: f32[64,3], index: 0, kind: input, shape index: {}]
  %s1 = inlined_call_operand.vmem [shape: f32[64,5], index: 1, kind: input, shape index: {}]
  %s2 = inlined_call_operand.vmem [shape: f32[64,1], index: 2, kind: input, shape index: {}]
  %s3 = inlined_call_operand.vmem [shape: f32[1,3], index: 3, kind: input, shape index: {}]
  %s4 = inlined_call_operand.vmem [shape: f32[3,64], index: 4, kind: input, shape index: {}]
  %s5 = inlined_call_operand.vmem [shape: f32[5,64], index: 5, kind: input, shape index: {}]
  %s6 = inlined_call_operand.vmem [shape: f32[3,64], index: 6, kind: input, shape index: {}]
  %s7 = inlined_call_operand.vmem [shape: f32[3,64], index: 7, kind: input, shape index: {}]
  %s8 = inlined_call_operand.vmem [shape: f32[1,64], index: 8, kind: input, shape index: {}]
  %s9 = inlined_call_operand.vmem [shape: f32[64,64], index: 9, kind: input, shape index: {}]
  %s10 = inlined_call_operand.vmem [shape: f32[1,64], index: 10, kind: input, shape index: {}]
  %s11 = inlined_call_operand.vmem [shape: f32[64,3], index: 11, kind: input, shape index: {}]
  %s12 = inlined_call_operand.vmem [shape: f32[1,3], index: 12, kind: input, shape index: {}]
  %s13 = inlined_call_operand.vmem [shape: f32[64,3], index: 13, kind: output, shape index: {}]
  %s14 = sld [smem:[#allocation0]]
  $region85: #{tpu_custom_call.1} parent=0
    _
  %s16 = ssub.s32 1, %s14
  %s17 = scalar_select 0, %s16, %s14
  loop: start=0, step=1, limit=6
  $region2: #{tpu_custom_call.1} parent=0 // loop_pre_header
    _
  $region3: #{tpu_custom_call.1} parent=0 // loop_header
    %s19 = sphi 0, %s23
    %p20 = scmp.ge.s32.totalorder %s19, 6
    %s29 = sphi 0, %s31
    %s32 = sphi 0, %s29
    %s33 = sphi 0, %s32
    %s49 = sphi 0, %s33
    %s55 = sphi 0, %s57
    %s58 = sphi 0, %s55
    %s59 = sphi 0, %s58
    %s75 = sphi 0, %s59
    %s81 = sphi 0, %s83
    %s84 = sphi 0, %s81
    %s85 = sphi 0, %s84
    %s101 = sphi 0, %s85
    %s105 = sphi 0, %s105
    %s107 = sphi 0, %s105
    %s108 = sphi 0, %s107
    %s122 = sphi 0, %s108
    %s126 = sphi 0, %s126
    %s128 = sphi 0, %s126
    %s129 = sphi 0, %s128
    %s143 = sphi 0, %s129
    %s147 = sphi 0, %s147
    %s149 = sphi 0, %s147
    %s150 = sphi 0, %s149
    %s164 = sphi 0, %s150
    %s168 = sphi 0, %s168
    %s170 = sphi 0, %s168
    %s171 = sphi 0, %s170
    %s185 = sphi 0, %s171
    %s189 = sphi 0, %s189
    %s191 = sphi 0, %s189
    %s192 = sphi 0, %s191
    %s206 = sphi 0, %s192
    %s210 = sphi 0, %s210
    %s212 = sphi 0, %s210
    %s213 = sphi 0, %s212
    %s227 = sphi 0, %s213
    %s231 = sphi 0, %s231
    %s233 = sphi 0, %s231
    %s234 = sphi 0, %s233
    %s248 = sphi 0, %s234
    %s252 = sphi 0, %s252
    %s254 = sphi 0, %s252
    %s255 = sphi 0, %s254
    %s269 = sphi 0, %s255
    %s273 = sphi 0, %s273
    %s275 = sphi 0, %s273
    %s276 = sphi 0, %s275
    %s290 = sphi 0, %s276
    %s294 = sphi 0, %s294
    %s296 = sphi 0, %s294
    %s297 = sphi 0, %s296
    %s311 = sphi 0, %s297
    %s317 = sphi 0, %s319
    %s320 = sphi 0, %s317
    %s321 = sphi 0, %s320
    %s337 = sphi 0, %s321
  $region4: #{tpu_custom_call.1} parent=0 // loop_header_branch
    %22 = sbr.rel (%p20) target = $region8
  $region5: #{tpu_custom_call.1} parent=0 // loop_body
    %s24 = ssub.s32 %s19, 1
    %s25 = ssub.s32 %s19, 2
    %s26 = sadd.s32 %s19, 1
    %s27 = ssub.s32 %s19, %s26
    %p28 = scmp.eq.s32.totalorder %s27, 0
    %s30 = sadd.s32 %s29, 1
    %s31 = scalar_select %p28, %s29, %s30
    %p34 = pneg %p28
    %p35 = scmp.eq.s32.totalorder %s19, 3
    %p36 = por %p34, %p35
    %p37 = scmp.ne.s32.totalorder %s29, %s32
    %p38 = scmp.eq.s32.totalorder %s19, 0
    %p39 = por %p37, %p38
    %p40 = scmp.ne.s32.totalorder %s29, %s32
    %p41 = scmp.eq.s32.totalorder %s24, 3
    %p42 = por %p40, %p41
    %p43 = scmp.ne.s32.totalorder %s32, %s33
    %p44 = scmp.eq.s32.totalorder %s24, 0
    %p45 = por %p43, %p44
    %p46 = scmp.ne.s32.totalorder %s32, %s33
    %p47 = scmp.eq.s32.totalorder %s25, 3
    %p48 = por %p46, %p47
    %p50 = scmp.ne.s32.totalorder %s33, %s49
    %p51 = scmp.eq.s32.totalorder %s25, 0
    %p52 = por %p50, %p51
    %s53 = ssub.s32 %s19, %s26
    %p54 = scmp.eq.s32.totalorder %s53, 0
    %s56 = sadd.s32 %s55, 1
    %s57 = scalar_select %p54, %s55, %s56
    %p60 = pneg %p54
    %p61 = scmp.eq.s32.totalorder %s19, 3
    %p62 = por %p60, %p61
    %p63 = scmp.ne.s32.totalorder %s55, %s58
    %p64 = scmp.eq.s32.totalorder %s19, 0
    %p65 = por %p63, %p64
    %p66 = scmp.ne.s32.totalorder %s55, %s58
    %p67 = scmp.eq.s32.totalorder %s24, 3
    %p68 = por %p66, %p67
    %p69 = scmp.ne.s32.totalorder %s58, %s59
    %p70 = scmp.eq.s32.totalorder %s24, 0
    %p71 = por %p69, %p70
    %p72 = scmp.ne.s32.totalorder %s58, %s59
    %p73 = scmp.eq.s32.totalorder %s25, 3
    %p74 = por %p72, %p73
    %p76 = scmp.ne.s32.totalorder %s59, %s75
    %p77 = scmp.eq.s32.totalorder %s25, 0
    %p78 = por %p76, %p77
    %s79 = ssub.s32 %s19, %s26
    %p80 = scmp.eq.s32.totalorder %s79, 0
    %s82 = sadd.s32 %s81, 1
    %s83 = scalar_select %p80, %s81, %s82
    %p86 = pneg %p80
    %p87 = scmp.eq.s32.totalorder %s19, 3
    %p88 = por %p86, %p87
    %p89 = scmp.ne.s32.totalorder %s81, %s84
    %p90 = scmp.eq.s32.totalorder %s19, 0
    %p91 = por %p89, %p90
    %p92 = scmp.ne.s32.totalorder %s81, %s84
    %p93 = scmp.eq.s32.totalorder %s24, 3
    %p94 = por %p92, %p93
    %p95 = scmp.ne.s32.totalorder %s84, %s85
    %p96 = scmp.eq.s32.totalorder %s24, 0
    %p97 = por %p95, %p96
    %p98 = scmp.ne.s32.totalorder %s84, %s85
    %p99 = scmp.eq.s32.totalorder %s25, 3
    %p100 = por %p98, %p99
    %p102 = scmp.ne.s32.totalorder %s85, %s101
    %p103 = scmp.eq.s32.totalorder %s25, 0
    %p104 = por %p102, %p103
    %s106 = sadd.s32 %s105, 1
    %p109 = scmp.eq.s32.totalorder %s19, 3
    %p110 = scmp.ne.s32.totalorder %s105, %s107
    %p111 = scmp.eq.s32.totalorder %s19, 0
    %p112 = por %p110, %p111
    %p113 = scmp.ne.s32.totalorder %s105, %s107
    %p114 = scmp.eq.s32.totalorder %s24, 3
    %p115 = por %p113, %p114
    %p116 = scmp.ne.s32.totalorder %s107, %s108
    %p117 = scmp.eq.s32.totalorder %s24, 0
    %p118 = por %p116, %p117
    %p119 = scmp.ne.s32.totalorder %s107, %s108
    %p120 = scmp.eq.s32.totalorder %s25, 3
    %p121 = por %p119, %p120
    %p123 = scmp.ne.s32.totalorder %s108, %s122
    %p124 = scmp.eq.s32.totalorder %s25, 0
    %p125 = por %p123, %p124
    %s127 = sadd.s32 %s126, 1
    %p130 = scmp.eq.s32.totalorder %s19, 3
    %p131 = scmp.ne.s32.totalorder %s126, %s128
    %p132 = scmp.eq.s32.totalorder %s19, 0
    %p133 = por %p131, %p132
    %p134 = scmp.ne.s32.totalorder %s126, %s128
    %p135 = scmp.eq.s32.totalorder %s24, 3
    %p136 = por %p134, %p135
    %p137 = scmp.ne.s32.totalorder %s128, %s129
    %p138 = scmp.eq.s32.totalorder %s24, 0
    %p139 = por %p137, %p138
    %p140 = scmp.ne.s32.totalorder %s128, %s129
    %p141 = scmp.eq.s32.totalorder %s25, 3
    %p142 = por %p140, %p141
    %p144 = scmp.ne.s32.totalorder %s129, %s143
    %p145 = scmp.eq.s32.totalorder %s25, 0
    %p146 = por %p144, %p145
    %s148 = sadd.s32 %s147, 1
    %p151 = scmp.eq.s32.totalorder %s19, 3
    %p152 = scmp.ne.s32.totalorder %s147, %s149
    %p153 = scmp.eq.s32.totalorder %s19, 0
    %p154 = por %p152, %p153
    %p155 = scmp.ne.s32.totalorder %s147, %s149
    %p156 = scmp.eq.s32.totalorder %s24, 3
    %p157 = por %p155, %p156
    %p158 = scmp.ne.s32.totalorder %s149, %s150
    %p159 = scmp.eq.s32.totalorder %s24, 0
    %p160 = por %p158, %p159
    %p161 = scmp.ne.s32.totalorder %s149, %s150
    %p162 = scmp.eq.s32.totalorder %s25, 3
    %p163 = por %p161, %p162
    %p165 = scmp.ne.s32.totalorder %s150, %s164
    %p166 = scmp.eq.s32.totalorder %s25, 0
    %p167 = por %p165, %p166
    %s169 = sadd.s32 %s168, 1
    %p172 = scmp.eq.s32.totalorder %s19, 3
    %p173 = scmp.ne.s32.totalorder %s168, %s170
    %p174 = scmp.eq.s32.totalorder %s19, 0
    %p175 = por %p173, %p174
    %p176 = scmp.ne.s32.totalorder %s168, %s170
    %p177 = scmp.eq.s32.totalorder %s24, 3
    %p178 = por %p176, %p177
    %p179 = scmp.ne.s32.totalorder %s170, %s171
    %p180 = scmp.eq.s32.totalorder %s24, 0
    %p181 = por %p179, %p180
    %p182 = scmp.ne.s32.totalorder %s170, %s171
    %p183 = scmp.eq.s32.totalorder %s25, 3
    %p184 = por %p182, %p183
    %p186 = scmp.ne.s32.totalorder %s171, %s185
    %p187 = scmp.eq.s32.totalorder %s25, 0
    %p188 = por %p186, %p187
    %s190 = sadd.s32 %s189, 1
    %p193 = scmp.eq.s32.totalorder %s19, 3
    %p194 = scmp.ne.s32.totalorder %s189, %s191
    %p195 = scmp.eq.s32.totalorder %s19, 0
    %p196 = por %p194, %p195
    %p197 = scmp.ne.s32.totalorder %s189, %s191
    %p198 = scmp.eq.s32.totalorder %s24, 3
    %p199 = por %p197, %p198
    %p200 = scmp.ne.s32.totalorder %s191, %s192
    %p201 = scmp.eq.s32.totalorder %s24, 0
    %p202 = por %p200, %p201
    %p203 = scmp.ne.s32.totalorder %s191, %s192
    %p204 = scmp.eq.s32.totalorder %s25, 3
    %p205 = por %p203, %p204
    %p207 = scmp.ne.s32.totalorder %s192, %s206
    %p208 = scmp.eq.s32.totalorder %s25, 0
    %p209 = por %p207, %p208
    %s211 = sadd.s32 %s210, 1
    %p214 = scmp.eq.s32.totalorder %s19, 3
    %p215 = scmp.ne.s32.totalorder %s210, %s212
    %p216 = scmp.eq.s32.totalorder %s19, 0
    %p217 = por %p215, %p216
    %p218 = scmp.ne.s32.totalorder %s210, %s212
    %p219 = scmp.eq.s32.totalorder %s24, 3
    %p220 = por %p218, %p219
    %p221 = scmp.ne.s32.totalorder %s212, %s213
    %p222 = scmp.eq.s32.totalorder %s24, 0
    %p223 = por %p221, %p222
    %p224 = scmp.ne.s32.totalorder %s212, %s213
    %p225 = scmp.eq.s32.totalorder %s25, 3
    %p226 = por %p224, %p225
    %p228 = scmp.ne.s32.totalorder %s213, %s227
    %p229 = scmp.eq.s32.totalorder %s25, 0
    %p230 = por %p228, %p229
    %s232 = sadd.s32 %s231, 1
    %p235 = scmp.eq.s32.totalorder %s19, 3
    %p236 = scmp.ne.s32.totalorder %s231, %s233
    %p237 = scmp.eq.s32.totalorder %s19, 0
    %p238 = por %p236, %p237
    %p239 = scmp.ne.s32.totalorder %s231, %s233
    %p240 = scmp.eq.s32.totalorder %s24, 3
    %p241 = por %p239, %p240
    %p242 = scmp.ne.s32.totalorder %s233, %s234
    %p243 = scmp.eq.s32.totalorder %s24, 0
    %p244 = por %p242, %p243
    %p245 = scmp.ne.s32.totalorder %s233, %s234
    %p246 = scmp.eq.s32.totalorder %s25, 3
    %p247 = por %p245, %p246
    %p249 = scmp.ne.s32.totalorder %s234, %s248
    %p250 = scmp.eq.s32.totalorder %s25, 0
    %p251 = por %p249, %p250
    %s253 = sadd.s32 %s252, 1
    %p256 = scmp.eq.s32.totalorder %s19, 3
    %p257 = scmp.ne.s32.totalorder %s252, %s254
    %p258 = scmp.eq.s32.totalorder %s19, 0
    %p259 = por %p257, %p258
    %p260 = scmp.ne.s32.totalorder %s252, %s254
    %p261 = scmp.eq.s32.totalorder %s24, 3
    %p262 = por %p260, %p261
    %p263 = scmp.ne.s32.totalorder %s254, %s255
    %p264 = scmp.eq.s32.totalorder %s24, 0
    %p265 = por %p263, %p264
    %p266 = scmp.ne.s32.totalorder %s254, %s255
    %p267 = scmp.eq.s32.totalorder %s25, 3
    %p268 = por %p266, %p267
    %p270 = scmp.ne.s32.totalorder %s255, %s269
    %p271 = scmp.eq.s32.totalorder %s25, 0
    %p272 = por %p270, %p271
    %s274 = sadd.s32 %s273, 1
    %p277 = scmp.eq.s32.totalorder %s19, 3
    %p278 = scmp.ne.s32.totalorder %s273, %s275
    %p279 = scmp.eq.s32.totalorder %s19, 0
    %p280 = por %p278, %p279
    %p281 = scmp.ne.s32.totalorder %s273, %s275
    %p282 = scmp.eq.s32.totalorder %s24, 3
    %p283 = por %p281, %p282
    %p284 = scmp.ne.s32.totalorder %s275, %s276
    %p285 = scmp.eq.s32.totalorder %s24, 0
    %p286 = por %p284, %p285
    %p287 = scmp.ne.s32.totalorder %s275, %s276
    %p288 = scmp.eq.s32.totalorder %s25, 3
    %p289 = por %p287, %p288
    %p291 = scmp.ne.s32.totalorder %s276, %s290
    %p292 = scmp.eq.s32.totalorder %s25, 0
    %p293 = por %p291, %p292
    %s295 = sadd.s32 %s294, 1
    %p298 = scmp.eq.s32.totalorder %s19, 3
    %p299 = scmp.ne.s32.totalorder %s294, %s296
    %p300 = scmp.eq.s32.totalorder %s19, 0
    %p301 = por %p299, %p300
    %p302 = scmp.ne.s32.totalorder %s294, %s296
    %p303 = scmp.eq.s32.totalorder %s24, 3
    %p304 = por %p302, %p303
    %p305 = scmp.ne.s32.totalorder %s296, %s297
    %p306 = scmp.eq.s32.totalorder %s24, 0
    %p307 = por %p305, %p306
    %p308 = scmp.ne.s32.totalorder %s296, %s297
    %p309 = scmp.eq.s32.totalorder %s25, 3
    %p310 = por %p308, %p309
    %p312 = scmp.ne.s32.totalorder %s297, %s311
    %p313 = scmp.eq.s32.totalorder %s25, 0
    %p314 = por %p312, %p313
    %s315 = ssub.s32 %s19, %s26
    %p316 = scmp.eq.s32.totalorder %s315, 0
    %s318 = sadd.s32 %s317, 1
    %s319 = scalar_select %p316, %s317, %s318
    %p322 = pneg %p316
    %p323 = scmp.eq.s32.totalorder %s19, 3
    %p324 = por %p322, %p323
    %p325 = scmp.ne.s32.totalorder %s317, %s320
    %p326 = scmp.eq.s32.totalorder %s19, 0
    %p327 = por %p325, %p326
    %p328 = scmp.ne.s32.totalorder %s317, %s320
    %p329 = scmp.eq.s32.totalorder %s24, 3
    %p330 = por %p328, %p329
    %p331 = scmp.ne.s32.totalorder %s320, %s321
    %p332 = scmp.eq.s32.totalorder %s24, 0
    %p333 = por %p331, %p332
    %p334 = scmp.ne.s32.totalorder %s320, %s321
    %p335 = scmp.eq.s32.totalorder %s25, 3
    %p336 = por %p334, %p335
    %p338 = scmp.ne.s32.totalorder %s321, %s337
    %p339 = scmp.eq.s32.totalorder %s25, 0
    %p340 = por %p338, %p339
    %p341 = scmp.le.s32.totalorder 1, %s19
    %p342 = scmp.lt.s32.totalorder %s19, 5
    %p343 = pnand %p341, %p342
    %p344 = pneg %p343
    // Predicated region
    $region9: #{tpu_custom_call.1} parent=5 // pred_check
      _
    $region10: #{tpu_custom_call.1} parent=5 // pred_check_branch
      %346 = sbr.rel (%p343) target = $region12
    $region11: #{tpu_custom_call.1} parent=5 // pred_region
      %s347 = ssub.s32 %s19, 1
      // Predicated region
      $region13: #{tpu_custom_call.1} parent=11 // pred_check
        %p348 = pneg %p118
      $region14: #{tpu_custom_call.1} parent=11 // pred_check_branch
        %350 = sbr.rel (%p348) target = $region16
      $region15: #{tpu_custom_call.1} parent=11 // pred_region
        _
      $region16: #{tpu_custom_call.1} parent=11 // pred_fallthru
        _
      // Predicated region
      $region17: #{tpu_custom_call.1} parent=11 // pred_check
        %p351 = pneg %p139
      $region18: #{tpu_custom_call.1} parent=11 // pred_check_branch
        %353 = sbr.rel (%p351) target = $region20
      $region19: #{tpu_custom_call.1} parent=11 // pred_region
        _
      $region20: #{tpu_custom_call.1} parent=11 // pred_fallthru
        _
      // Predicated region
      $region21: #{tpu_custom_call.1} parent=11 // pred_check
        %p354 = pneg %p160
      $region22: #{tpu_custom_call.1} parent=11 // pred_check_branch
        %356 = sbr.rel (%p354) target = $region24
      $region23: #{tpu_custom_call.1} parent=11 // pred_region
        _
      $region24: #{tpu_custom_call.1} parent=11 // pred_fallthru
        _
      // Predicated region
      $region25: #{tpu_custom_call.1} parent=11 // pred_check
        %p357 = pneg %p181
      $region26: #{tpu_custom_call.1} parent=11 // pred_check_branch
        %359 = sbr.rel (%p357) target = $region28
      $region27: #{tpu_custom_call.1} parent=11 // pred_region
        _
      $region28: #{tpu_custom_call.1} parent=11 // pred_fallthru
        _
      // Predicated region
      $region29: #{tpu_custom_call.1} parent=11 // pred_check
        %p360 = pneg %p202
      $region30: #{tpu_custom_call.1} parent=11 // pred_check_branch
        %362 = sbr.rel (%p360) target = $region32
      $region31: #{tpu_custom_call.1} parent=11 // pred_region
        _
      $region32: #{tpu_custom_call.1} parent=11 // pred_fallthru
        _
      // Predicated region
      $region33: #{tpu_custom_call.1} parent=11 // pred_check
        %p363 = pneg %p223
      $region34: #{tpu_custom_call.1} parent=11 // pred_check_branch
        %365 = sbr.rel (%p363) target = $region36
      $region35: #{tpu_custom_call.1} parent=11 // pred_region
        _
      $region36: #{tpu_custom_call.1} parent=11 // pred_fallthru
        _
      // Predicated region
      $region37: #{tpu_custom_call.1} parent=11 // pred_check
        %p366 = pneg %p244
      $region38: #{tpu_custom_call.1} parent=11 // pred_check_branch
        %368 = sbr.rel (%p366) target = $region40
      $region39: #{tpu_custom_call.1} parent=11 // pred_region
        _
      $region40: #{tpu_custom_call.1} parent=11 // pred_fallthru
        _
      // Predicated region
      $region41: #{tpu_custom_call.1} parent=11 // pred_check
        %p369 = pneg %p265
      $region42: #{tpu_custom_call.1} parent=11 // pred_check_branch
        %371 = sbr.rel (%p369) target = $region44
      $region43: #{tpu_custom_call.1} parent=11 // pred_region
        _
      $region44: #{tpu_custom_call.1} parent=11 // pred_fallthru
        _
      // Predicated region
      $region45: #{tpu_custom_call.1} parent=11 // pred_check
        %p372 = pneg %p286
      $region46: #{tpu_custom_call.1} parent=11 // pred_check_branch
        %374 = sbr.rel (%p372) target = $region48
      $region47: #{tpu_custom_call.1} parent=11 // pred_region
        _
      $region48: #{tpu_custom_call.1} parent=11 // pred_fallthru
        _
      // Predicated region
      $region49: #{tpu_custom_call.1} parent=11 // pred_check
        %p375 = pneg %p307
      $region50: #{tpu_custom_call.1} parent=11 // pred_check_branch
        %377 = sbr.rel (%p375) target = $region52
      $region51: #{tpu_custom_call.1} parent=11 // pred_region
        _
      $region52: #{tpu_custom_call.1} parent=11 // pred_fallthru
        _
    $region12: #{tpu_custom_call.1} parent=5 // pred_fallthru
      _
    %p378 = scmp.lt.s32.totalorder %s19, 4
    // Predicated region
    $region53: #{tpu_custom_call.1} parent=5 // pred_check
      %p379 = pneg %p378
    $region54: #{tpu_custom_call.1} parent=5 // pred_check_branch
      %381 = sbr.rel (%p379) target = $region56
    $region55: #{tpu_custom_call.1} parent=5 // pred_region
      // Predicated region
      $region57: #{tpu_custom_call.1} parent=55 // pred_check
        %p382 = pneg %p39
      $region58: #{tpu_custom_call.1} parent=55 // pred_check_branch
        %384 = sbr.rel (%p382) target = $region60
      $region59: #{tpu_custom_call.1} parent=55 // pred_region
        %s385 = smul.u32 2, %s19
        %p386 = scmp.lt.s32.totalorder %s385, 7
        %s387 = scalar_select %p386, %s385, 7
        %s388 = smul.addr %s387, 8
        %s389 = scalar_lea.vmem %s0, %s388
        %s390 = smul.u32 2, %s19
      $region60: #{tpu_custom_call.1} parent=55 // pred_fallthru
        _
      // Predicated region
      $region61: #{tpu_custom_call.1} parent=55 // pred_check
        %p391 = pneg %p65
      $region62: #{tpu_custom_call.1} parent=55 // pred_check_branch
        %393 = sbr.rel (%p391) target = $region64
      $region63: #{tpu_custom_call.1} parent=55 // pred_region
        %s394 = smul.u32 2, %s19
        %p395 = scmp.lt.s32.totalorder %s394, 7
        %s396 = scalar_select %p395, %s394, 7
        %s397 = smul.addr %s396, 8
        %s398 = scalar_lea.vmem %s1, %s397
        %s399 = smul.u32 2, %s19
      $region64: #{tpu_custom_call.1} parent=55 // pred_fallthru
        _
      // Predicated region
      $region65: #{tpu_custom_call.1} parent=55 // pred_check
        %p400 = pneg %p91
      $region66: #{tpu_custom_call.1} parent=55 // pred_check_branch
        %402 = sbr.rel (%p400) target = $region68
      $region67: #{tpu_custom_call.1} parent=55 // pred_region
        %s403 = smul.u32 2, %s19
        %p404 = scmp.lt.s32.totalorder %s403, 7
        %s405 = scalar_select %p404, %s403, 7
        %s406 = smul.addr %s405, 8
        %s407 = scalar_lea.vmem %s2, %s406
        %s408 = smul.u32 2, %s19
      $region68: #{tpu_custom_call.1} parent=55 // pred_fallthru
        _
    $region56: #{tpu_custom_call.1} parent=5 // pred_fallthru
      _
    %p409 = scmp.le.s32.totalorder 1, %s19
    %p410 = scmp.lt.s32.totalorder %s19, 5
    %p411 = pnand %p409, %p410
    %p412 = pneg %p411
    // Predicated region
    $region69: #{tpu_custom_call.1} parent=5 // pred_check
      _
    $region70: #{tpu_custom_call.1} parent=5 // pred_check_branch
      %414 = sbr.rel (%p411) target = $region72
    $region71: #{tpu_custom_call.1} parent=5 // pred_region
      %s415 = ssub.s32 %s19, 1
      %s416 = smul.u32 2, %s24
      %p417 = scmp.lt.s32.totalorder %s416, 7
      %s418 = scalar_select %p417, %s416, 7
      %s419 = smul.addr %s418, 8
      %s420 = scalar_lea.vmem %s0, %s419
      %p421 = pneg %p45
      %p422 = pneg %p42
      %s423 = smul.u32 2, %s24
      %p424 = scmp.lt.s32.totalorder %s423, 7
      %s425 = scalar_select %p424, %s423, 7
      %s426 = smul.addr %s425, 8
      %s427 = scalar_lea.vmem %s1, %s426
      %p428 = pneg %p71
      %p429 = pneg %p68
      %s430 = smul.u32 2, %s24
      %p431 = scmp.lt.s32.totalorder %s430, 7
      %s432 = scalar_select %p431, %s430, 7
      %s433 = smul.addr %s432, 8
      %s434 = scalar_lea.vmem %s2, %s433
      %p435 = pneg %p97
      %p436 = pneg %p94
      %p437 = pneg %p118
      %p438 = pneg %p115
      %p439 = pneg %p139
      %p440 = pneg %p136
      %p441 = pneg %p160
      %p442 = pneg %p157
      %p443 = pneg %p181
      %p444 = pneg %p178
      %p445 = pneg %p202
      %p446 = pneg %p199
      %p447 = pneg %p223
      %p448 = pneg %p220
      %p449 = pneg %p244
      %p450 = pneg %p241
      %p451 = pneg %p265
      %p452 = pneg %p262
      %p453 = pneg %p286
      %p454 = pneg %p283
      %p455 = pneg %p307
      %p456 = pneg %p304
      %p457 = pneg %p333
      %p458 = pneg %p330
      %s459 = smul.u32 2, %s24
      %p460 = scmp.lt.s32.totalorder %s459, 7
      %s461 = scalar_select %p460, %s459, 7
      %s462 = smul.addr %s461, 8
      %s463 = scalar_lea.vmem %s13, %s462
      %s464 = smul.u32 2, %s24
      %p465 = scmp.lt.s32.totalorder %s464, 7
      %s466 = scalar_select %p465, %s464, 7
      %s467 = smul.addr %s466, 8
      %s468 = scalar_lea.vmem %s0, %s467
      %s469 = smul.u32 2, %s24
      %s470 = smul.u32 2, %s24
      %p471 = scmp.lt.s32.totalorder %s470, 7
      %s472 = scalar_select %p471, %s470, 7
      %s473 = smul.addr %s472, 8
      %s474 = scalar_lea.vmem %s1, %s473
      %s475 = smul.u32 2, %s24
      %s476 = smul.u32 2, %s24
      %p477 = scmp.lt.s32.totalorder %s476, 7
      %s478 = scalar_select %p477, %s476, 7
      %s479 = smul.addr %s478, 8
      %s480 = scalar_lea.vmem %s2, %s479
      %s481 = smul.u32 2, %s24
      %s482 = smul.u32 2, %s24
      %p483 = scmp.lt.s32.totalorder %s482, 7
      %s484 = scalar_select %p483, %s482, 7
      %s485 = smul.addr %s484, 8
      %s486 = scalar_lea.vmem %s13, %s485
      %s487 = smul.u32 2, %s24
      %v488 = vld [vmem:[%s480] sm:$0xff]
      %v489 = vld [vmem:[%s480 + $0x8] sm:$0xff]
      %v490 = vld [vmem:[%s3] sm:$0x1]
      %492 = vset.pattern.permute.xlu0 0
      %493 = vperm.xlu0 %492, %v488
      %v494 = vpop.permute.xlu0 %493
      %497 = vset.pattern.permute.xlu0 0
      %498 = vperm.xlu0 %497, %v489
      %v499 = vpop.permute.xlu0 %498
      %v502 = vlaneseq
      %v503 = vshrl.u32 %v502, 7
      %v504 = vsub.s32 0, %v503
      %v505 = vrot.slane %v490, %v504
      %v507 = vmul.f32 %v494, %v505
      %v508 = vmul.f32 %v499, %v505
      %v509 = vld [vmem:[%s468] sm:$0xff]
      %v510 = vld [vmem:[%s468 + $0x8] sm:$0xff]
      %v511 = vld [vmem:[%s4] sm:$0x7]
      %v512 = vld [vmem:[%s474] sm:$0xff]
      %v513 = vld [vmem:[%s474 + $0x8] sm:$0xff]
      %v514 = vld [vmem:[%s5] sm:$0x1f]
      %vm515 = vcmask 39936
      %v517 = vsel %vm515, %v512, 0
      %v520 = vsel %vm515, %v513, 0
      %vm522 = vcmask 1044480
      %v524 = vsel %vm522, %v514, 0
      %526 = vmatprep.subr.mxu0 0.0
      %527 = vmatpush1.msra.mxu0 0.0
      %528 = vmatprep.subr.mxu0 0.0
      %529 = vmatpush1.msra.mxu0 0.0
      %530 = vmatprep.subr.mxu0 0.0
      %531 = vmatpush1.msra.mxu0 0.0
      %532 = vmatprep.subr.mxu0 0.0
      %533 = vmatpush1.msra.mxu0 0.0
      %534 = vmatprep.subr.mxu0 0.0
      %535 = vmatpush1.msra.mxu0 0.0
      %536 = vmatprep.subr.mxu0 0.0
      %537 = vmatpush1.msra.mxu0 0.0
      %538 = vmatprep.subr.mxu0 0.0
      %539 = vmatpush1.msra.mxu0 0.0
      %540 = vmatprep.subr.mxu0 0.0
      %541 = vmatpush1.msra.mxu0 0.0
      %542 = vmatprep.subr.mxu0 0.0
      %543 = vmatpush1.msra.mxu0 0.0
      %544 = vmatprep.subr.mxu0 0.0
      %545 = vmatpush1.msra.mxu0 0.0
      %546 = vmatprep.subr.mxu0 0.0
      %547 = vmatpush1.msra.mxu0 0.0
      %548 = vmatprep.subr.mxu0 0.0
      %549 = vmatpush1.msra.mxu0 0.0
      %550 = vmatprep.subr.mxu0 0.0
      %551 = vmatpush1.msra.mxu0 0.0
      %552 = vmatprep.subr.mxu0 0.0
      %553 = vmatpush1.msra.mxu0 0.0
      %554 = vmatprep.subr.mxu0 0.0
      %555 = vmatpush1.msra.mxu0 0.0
      %556 = vmatprep.subr.mxu0 0.0
      %557 = vmatpush1.msra.mxu0 %v524
      %558 = vmatprep.subr.mxu0 0.0
      %559 = vmatpush2.msra.mxu0 0.0
      %560 = vmatprep.subr.mxu0 0.0
      %561 = vmatpush2.msra.mxu0 0.0
      %562 = vmatprep.subr.mxu0 0.0
      %563 = vmatpush2.msra.mxu0 0.0
      %564 = vmatprep.subr.mxu0 0.0
      %565 = vmatpush2.msra.mxu0 0.0
      %566 = vmatprep.subr.mxu0 0.0
      %567 = vmatpush2.msra.mxu0 0.0
      %568 = vmatprep.subr.mxu0 0.0
      %569 = vmatpush2.msra.mxu0 0.0
      %570 = vmatprep.subr.mxu0 0.0
      %571 = vmatpush2.msra.mxu0 0.0
      %572 = vmatprep.subr.mxu0 0.0
      %573 = vmatpush2.msra.mxu0 0.0
      %574 = vmatprep.subr.mxu0 0.0
      %575 = vmatpush2.msra.mxu0 0.0
      %576 = vmatprep.subr.mxu0 0.0
      %577 = vmatpush2.msra.mxu0 0.0
      %578 = vmatprep.subr.mxu0 0.0
      %579 = vmatpush2.msra.mxu0 0.0
      %580 = vmatprep.subr.mxu0 0.0
      %581 = vmatpush2.msra.mxu0 0.0
      %582 = vmatprep.subr.mxu0 0.0
      %583 = vmatpush2.msra.mxu0 0.0
      %584 = vmatprep.subr.mxu0 0.0
      %585 = vmatpush2.msra.mxu0 0.0
      %586 = vmatprep.subr.mxu0 0.0
      %587 = vmatpush2.msra.mxu0 0.0
      %588 = vmatprep.subr.mxu0 0.0
      %589 = vmatpush2.msra.mxu0 0.0
      %590 = vmatprep.mubr.f32.mxu0 0.0
      %591 = vmatmul.mubr.f32.gmra.mxu0 %v517
      %v592 = vpop.f32.mrf.mxu0
      %v593 = vadd.f32 0.0, %v592
      %v594 = vpop.f32.mrf.mxu0
      %595 = vmatprep.mubr.f32.mxu0 0.0
      %596 = vmatmul.mubr.f32.gmra.mxu0 %v520
      %v597 = vpop.f32.mrf.mxu0
      %v598 = vadd.f32 0.0, %v597
      %v599 = vpop.f32.mrf.mxu0
      %600 = vdwg.mxu0
      %vm601 = vcmask 23552
      %v603 = vsel %vm601, %v509, 0
      %v606 = vsel %vm601, %v510, 0
      %vm608 = vcmask 1042432
      %v610 = vsel %vm608, %v511, 0
      %612 = vmatprep.subr.mxu0 0.0
      %613 = vmatpush1.msra.mxu0 0.0
      %614 = vmatprep.subr.mxu0 0.0
      %615 = vmatpush1.msra.mxu0 0.0
      %616 = vmatprep.subr.mxu0 0.0
      %617 = vmatpush1.msra.mxu0 0.0
      %618 = vmatprep.subr.mxu0 0.0
      %619 = vmatpush1.msra.mxu0 0.0
      %620 = vmatprep.subr.mxu0 0.0
      %621 = vmatpush1.msra.mxu0 0.0
      %622 = vmatprep.subr.mxu0 0.0
      %623 = vmatpush1.msra.mxu0 0.0
      %624 = vmatprep.subr.mxu0 0.0
      %625 = vmatpush1.msra.mxu0 0.0
      %626 = vmatprep.subr.mxu0 0.0
      %627 = vmatpush1.msra.mxu0 0.0
      %628 = vmatprep.subr.mxu0 0.0
      %629 = vmatpush1.msra.mxu0 0.0
      %630 = vmatprep.subr.mxu0 0.0
      %631 = vmatpush1.msra.mxu0 0.0
      %632 = vmatprep.subr.mxu0 0.0
      %633 = vmatpush1.msra.mxu0 0.0
      %634 = vmatprep.subr.mxu0 0.0
      %635 = vmatpush1.msra.mxu0 0.0
      %636 = vmatprep.subr.mxu0 0.0
      %637 = vmatpush1.msra.mxu0 0.0
      %638 = vmatprep.subr.mxu0 0.0
      %639 = vmatpush1.msra.mxu0 0.0
      %640 = vmatprep.subr.mxu0 0.0
      %641 = vmatpush1.msra.mxu0 0.0
      %642 = vmatprep.subr.mxu0 0.0
      %643 = vmatpush1.msra.mxu0 %v610
      %644 = vmatprep.subr.mxu0 0.0
      %645 = vmatpush2.msra.mxu0 0.0
      %646 = vmatprep.subr.mxu0 0.0
      %647 = vmatpush2.msra.mxu0 0.0
      %648 = vmatprep.subr.mxu0 0.0
      %649 = vmatpush2.msra.mxu0 0.0
      %650 = vmatprep.subr.mxu0 0.0
      %651 = vmatpush2.msra.mxu0 0.0
      %652 = vmatprep.subr.mxu0 0.0
      %653 = vmatpush2.msra.mxu0 0.0
      %654 = vmatprep.subr.mxu0 0.0
      %655 = vmatpush2.msra.mxu0 0.0
      %656 = vmatprep.subr.mxu0 0.0
      %657 = vmatpush2.msra.mxu0 0.0
      %658 = vmatprep.subr.mxu0 0.0
      %659 = vmatpush2.msra.mxu0 0.0
      %660 = vmatprep.subr.mxu0 0.0
      %661 = vmatpush2.msra.mxu0 0.0
      %662 = vmatprep.subr.mxu0 0.0
      %663 = vmatpush2.msra.mxu0 0.0
      %664 = vmatprep.subr.mxu0 0.0
      %665 = vmatpush2.msra.mxu0 0.0
      %666 = vmatprep.subr.mxu0 0.0
      %667 = vmatpush2.msra.mxu0 0.0
      %668 = vmatprep.subr.mxu0 0.0
      %669 = vmatpush2.msra.mxu0 0.0
      %670 = vmatprep.subr.mxu0 0.0
      %671 = vmatpush2.msra.mxu0 0.0
      %672 = vmatprep.subr.mxu0 0.0
      %673 = vmatpush2.msra.mxu0 0.0
      %674 = vmatprep.subr.mxu0 0.0
      %675 = vmatpush2.msra.mxu0 0.0
      %676 = vmatprep.mubr.f32.mxu0 0.0
      %677 = vmatmul.mubr.f32.gmra.mxu0 %v603
      %v678 = vpop.f32.mrf.mxu0
      %v679 = vadd.f32 %v593, %v678
      %v680 = vpop.f32.mrf.mxu0
      %681 = vmatprep.mubr.f32.mxu0 0.0
      %682 = vmatmul.mubr.f32.gmra.mxu0 %v606
      %v683 = vpop.f32.mrf.mxu0
      %v684 = vadd.f32 %v598, %v683
      %v685 = vpop.f32.mrf.mxu0
      %686 = vdwg.mxu0
      %v687 = vand.u32 2147483647, %v507
      %vm688 = vcmp.le.f32.partialorder %v687, 0.7853982
      %vm689 = vcmp.lt.s32.totalorder %v507, 0
      %v690 = vand.u32 %v507, 2139095040
      %v691 = vshrl.u32 %v690, 23
      %v692 = vsub.s32 %v691, 127
      %v693 = vand.u32 2147483647, %v507
      %v694 = vand.u32 %v693, 8388607
      %v695 = vor.u32 %v694, 8388608
      %v696 = vsub.s32 0, %v695
      %v697 = vadd.s32 %v692, 1
      %vm698 = vcmp.gt.s32.totalorder %v697, 0
      %v699 = vsel %vm698, %v697, 0
      %v700 = vshrl.u32 %v699, 5
      %v701 = vand.u32 %v699, 31
      %v702 = vsub.s32 32, %v701
      %v703 = vshrl.u32 683565275, %v702
      %v704 = vshll.u32 683565275, %v701
      %v705 = vshrl.u32 2475754826, %v702
      %v706 = vor.u32 %v704, %v705
      %v707 = vshll.u32 2475754826, %v701
      %v708 = vshrl.u32 2131351028, %v702
      %v709 = vor.u32 %v707, %v708
      %v710 = vshll.u32 2131351028, %v701
      %v711 = vshrl.u32 2102212464, %v702
      %v712 = vor.u32 %v710, %v711
      %v713 = vshll.u32 2102212464, %v701
      %v714 = vshrl.u32 920167782, %v702
      %v715 = vor.u32 %v713, %v714
      %v716 = vshll.u32 920167782, %v701
      %v717 = vshrl.u32 1326507024, %v702
      %v718 = vor.u32 %v716, %v717
      %vm719 = vcmp.lt.s32.totalorder %v700, 1
      %vm720 = vcmp.lt.s32.totalorder %v700, 2
      %vm721 = vcmp.lt.s32.totalorder %v700, 3
      %vm722 = vcmp.lt.s32.totalorder %v700, 4
      %v723 = vsel %vm719, %v703, %v706
      %v724 = vsel %vm722, %v712, 2102212464
      %v725 = vsel %vm721, %v709, %v724
      %v726 = vsel %vm720, %v723, %v725
      %v727 = vsel %vm719, %v706, %v709
      %v728 = vsel %vm722, %v715, 920167782
      %v729 = vsel %vm721, %v712, %v728
      %v730 = vsel %vm720, %v727, %v729
      %v731 = vsel %vm719, %v709, %v712
      %v732 = vsel %vm722, %v718, 1326507024
      %v733 = vsel %vm721, %v715, %v732
      %v734 = vsel %vm720, %v731, %v733
      %v735 = vshll.u32 %v695, 8
      %v736 = vmul.u32.u64.compose %v735, %v734
      %v737 = vextract.low.u32 %v736
      %v738 = vextract.high.u32 %v736
      %v739 = vmul.u32.u64.compose %v735, %v730
      %v740 = vextract.low.u32 %v739
      %v741 = vextract.high.u32 %v739
      %v742 = vmul.u32 %v735, %v726
      %v743 = vadd.s32 %v738, %v740
      %vm744 = vc.u32 %v738, %v740
      %v745 = vadd.s32 %v741, 1
      %v746 = vsel %vm744, %v745, %v741
      %v747 = vadd.s32 %v742, %v746
      %v748 = vadd.s32 %v747, 536870912
      %v749 = vshrl.u32 %v748, 30
      %v750 = vshll.u32 %v749, 30
      %v751 = vsub.s32 %v747, %v750
      %vm752 = vcmp.lt.s32.totalorder %v751, 0
      %v753 = vsub.s32 0, %v751
      %v754 = vsel %vm752, %v753, %v751
      %v755 = vclz %v754
      %v756 = vsub.s32 %v755, 2
      %vm757 = vcmp.gt.s32.totalorder 0, %v756
      %v758 = vsel %vm757, 0, %v756
      %v759 = vsub.s32 32, %v758
      %v760 = vshll.u32 %v751, %v758
      %v761 = vshrl.u32 %v743, %v759
      %v762 = vor.u32 %v760, %v761
      %v763 = vsub.s32 4294967266, %v758
      %v764 = vadd.s32 %v763, 127
      %v765 = vshll.u32 %v764, 23
      %v766 = vor.u32 4788187, %v765
      %v767 = vand.u32 2147483647, %v766
      %v769 = vcvt.s32.f32 %v762
      %v770 = vmul.f32 %v769, %v767
      %v771 = vxor.u32 %v770, 2147483648
      %v772 = vsel %vm689, %v771, %v770
      %v773 = vsub.s32 4, %v749
      %v774 = vsel %vm689, %v773, %v749
      %v775 = vsel %vm688, %v507, %v772
      %v776 = vsel %vm688, 0, %v774
      %v777 = vcosq.f32.pop %v775
      %v778 = vsinq.f32.pop %v775
      %vm779 = vweird.f32 %v507
      %v780 = vand.u32 %v776, 3
      %vm781 = vcmp.lt.s32.totalorder %v780, 2
      %vm782 = vcmp.eq.s32.totalorder %v780, 0
      %v783 = vxor.u32 %v778, 2147483648
      %v784 = vsel %vm782, %v777, %v783
      %vm785 = vcmp.eq.s32.totalorder %v780, 2
      %v786 = vxor.u32 %v777, 2147483648
      %v787 = vsel %vm785, %v786, %v778
      %v788 = vsel %vm781, %v784, %v787
      %v789 = vsel %vm779, nan, %v788
      %v790 = vand.u32 2147483647, %v508
      %vm791 = vcmp.le.f32.partialorder %v790, 0.7853982
      %vm792 = vcmp.lt.s32.totalorder %v508, 0
      %v793 = vand.u32 %v508, 2139095040
      %v794 = vshrl.u32 %v793, 23
      %v795 = vsub.s32 %v794, 127
      %v796 = vand.u32 2147483647, %v508
      %v797 = vand.u32 %v796, 8388607
      %v798 = vor.u32 %v797, 8388608
      %v799 = vsub.s32 0, %v798
      %v800 = vadd.s32 %v795, 1
      %vm801 = vcmp.gt.s32.totalorder %v800, 0
      %v802 = vsel %vm801, %v800, 0
      %v803 = vshrl.u32 %v802, 5
      %v804 = vand.u32 %v802, 31
      %v805 = vsub.s32 32, %v804
      %v806 = vshrl.u32 683565275, %v805
      %v807 = vshll.u32 683565275, %v804
      %v808 = vshrl.u32 2475754826, %v805
      %v809 = vor.u32 %v807, %v808
      %v810 = vshll.u32 2475754826, %v804
      %v811 = vshrl.u32 2131351028, %v805
      %v812 = vor.u32 %v810, %v811
      %v813 = vshll.u32 2131351028, %v804
      %v814 = vshrl.u32 2102212464, %v805
      %v815 = vor.u32 %v813, %v814
      %v816 = vshll.u32 2102212464, %v804
      %v817 = vshrl.u32 920167782, %v805
      %v818 = vor.u32 %v816, %v817
      %v819 = vshll.u32 920167782, %v804
      %v820 = vshrl.u32 1326507024, %v805
      %v821 = vor.u32 %v819, %v820
      %vm822 = vcmp.lt.s32.totalorder %v803, 1
      %vm823 = vcmp.lt.s32.totalorder %v803, 2
      %vm824 = vcmp.lt.s32.totalorder %v803, 3
      %vm825 = vcmp.lt.s32.totalorder %v803, 4
      %v826 = vsel %vm822, %v806, %v809
      %v827 = vsel %vm825, %v815, 2102212464
      %v828 = vsel %vm824, %v812, %v827
      %v829 = vsel %vm823, %v826, %v828
      %v830 = vsel %vm822, %v809, %v812
      %v831 = vsel %vm825, %v818, 920167782
      %v832 = vsel %vm824, %v815, %v831
      %v833 = vsel %vm823, %v830, %v832
      %v834 = vsel %vm822, %v812, %v815
      %v835 = vsel %vm825, %v821, 1326507024
      %v836 = vsel %vm824, %v818, %v835
      %v837 = vsel %vm823, %v834, %v836
      %v838 = vshll.u32 %v798, 8
      %v839 = vmul.u32.u64.compose %v838, %v837
      %v840 = vextract.low.u32 %v839
      %v841 = vextract.high.u32 %v839
      %v842 = vmul.u32.u64.compose %v838, %v833
      %v843 = vextract.low.u32 %v842
      %v844 = vextract.high.u32 %v842
      %v845 = vmul.u32 %v838, %v829
      %v846 = vadd.s32 %v841, %v843
      %vm847 = vc.u32 %v841, %v843
      %v848 = vadd.s32 %v844, 1
      %v849 = vsel %vm847, %v848, %v844
      %v850 = vadd.s32 %v845, %v849
      %v851 = vadd.s32 %v850, 536870912
      %v852 = vshrl.u32 %v851, 30
      %v853 = vshll.u32 %v852, 30
      %v854 = vsub.s32 %v850, %v853
      %vm855 = vcmp.lt.s32.totalorder %v854, 0
      %v856 = vsub.s32 0, %v854
      %v857 = vsel %vm855, %v856, %v854
      %v858 = vclz %v857
      %v859 = vsub.s32 %v858, 2
      %vm860 = vcmp.gt.s32.totalorder 0, %v859
      %v861 = vsel %vm860, 0, %v859
      %v862 = vsub.s32 32, %v861
      %v863 = vshll.u32 %v854, %v861
      %v864 = vshrl.u32 %v846, %v862
      %v865 = vor.u32 %v863, %v864
      %v866 = vsub.s32 4294967266, %v861
      %v867 = vadd.s32 %v866, 127
      %v868 = vshll.u32 %v867, 23
      %v869 = vor.u32 4788187, %v868
      %v870 = vand.u32 2147483647, %v869
      %v872 = vcvt.s32.f32 %v865
      %v873 = vmul.f32 %v872, %v870
      %v874 = vxor.u32 %v873, 2147483648
      %v875 = vsel %vm792, %v874, %v873
      %v876 = vsub.s32 4, %v852
      %v877 = vsel %vm792, %v876, %v852
      %v878 = vsel %vm791, %v508, %v875
      %v879 = vsel %vm791, 0, %v877
      %v880 = vcosq.f32.pop %v878
      %v881 = vsinq.f32.pop %v878
      %vm882 = vweird.f32 %v508
      %v883 = vand.u32 %v879, 3
      %vm884 = vcmp.lt.s32.totalorder %v883, 2
      %vm885 = vcmp.eq.s32.totalorder %v883, 0
      %v886 = vxor.u32 %v881, 2147483648
      %v887 = vsel %vm885, %v880, %v886
      %vm888 = vcmp.eq.s32.totalorder %v883, 2
      %v889 = vxor.u32 %v880, 2147483648
      %v890 = vsel %vm888, %v889, %v881
      %v891 = vsel %vm884, %v887, %v890
      %v892 = vsel %vm882, nan, %v891
      %v893 = vld [vmem:[%s6] sm:$0x7]
      %v895 = vsel %vm601, %v789, 0
      %v898 = vsel %vm601, %v892, 0
      %v901 = vsel %vm608, %v893, 0
      %903 = vmatprep.subr.mxu0 0.0
      %904 = vmatpush1.msra.mxu0 0.0
      %905 = vmatprep.subr.mxu0 0.0
      %906 = vmatpush1.msra.mxu0 0.0
      %907 = vmatprep.subr.mxu0 0.0
      %908 = vmatpush1.msra.mxu0 0.0
      %909 = vmatprep.subr.mxu0 0.0
      %910 = vmatpush1.msra.mxu0 0.0
      %911 = vmatprep.subr.mxu0 0.0
      %912 = vmatpush1.msra.mxu0 0.0
      %913 = vmatprep.subr.mxu0 0.0
      %914 = vmatpush1.msra.mxu0 0.0
      %915 = vmatprep.subr.mxu0 0.0
      %916 = vmatpush1.msra.mxu0 0.0
      %917 = vmatprep.subr.mxu0 0.0
      %918 = vmatpush1.msra.mxu0 0.0
      %919 = vmatprep.subr.mxu0 0.0
      %920 = vmatpush1.msra.mxu0 0.0
      %921 = vmatprep.subr.mxu0 0.0
      %922 = vmatpush1.msra.mxu0 0.0
      %923 = vmatprep.subr.mxu0 0.0
      %924 = vmatpush1.msra.mxu0 0.0
      %925 = vmatprep.subr.mxu0 0.0
      %926 = vmatpush1.msra.mxu0 0.0
      %927 = vmatprep.subr.mxu0 0.0
      %928 = vmatpush1.msra.mxu0 0.0
      %929 = vmatprep.subr.mxu0 0.0
      %930 = vmatpush1.msra.mxu0 0.0
      %931 = vmatprep.subr.mxu0 0.0
      %932 = vmatpush1.msra.mxu0 0.0
      %933 = vmatprep.subr.mxu0 0.0
      %934 = vmatpush1.msra.mxu0 %v901
      %935 = vmatprep.subr.mxu0 0.0
      %936 = vmatpush2.msra.mxu0 0.0
      %937 = vmatprep.subr.mxu0 0.0
      %938 = vmatpush2.msra.mxu0 0.0
      %939 = vmatprep.subr.mxu0 0.0
      %940 = vmatpush2.msra.mxu0 0.0
      %941 = vmatprep.subr.mxu0 0.0
      %942 = vmatpush2.msra.mxu0 0.0
      %943 = vmatprep.subr.mxu0 0.0
      %944 = vmatpush2.msra.mxu0 0.0
      %945 = vmatprep.subr.mxu0 0.0
      %946 = vmatpush2.msra.mxu0 0.0
      %947 = vmatprep.subr.mxu0 0.0
      %948 = vmatpush2.msra.mxu0 0.0
      %949 = vmatprep.subr.mxu0 0.0
      %950 = vmatpush2.msra.mxu0 0.0
      %951 = vmatprep.subr.mxu0 0.0
      %952 = vmatpush2.msra.mxu0 0.0
      %953 = vmatprep.subr.mxu0 0.0
      %954 = vmatpush2.msra.mxu0 0.0
      %955 = vmatprep.subr.mxu0 0.0
      %956 = vmatpush2.msra.mxu0 0.0
      %957 = vmatprep.subr.mxu0 0.0
      %958 = vmatpush2.msra.mxu0 0.0
      %959 = vmatprep.subr.mxu0 0.0
      %960 = vmatpush2.msra.mxu0 0.0
      %961 = vmatprep.subr.mxu0 0.0
      %962 = vmatpush2.msra.mxu0 0.0
      %963 = vmatprep.subr.mxu0 0.0
      %964 = vmatpush2.msra.mxu0 0.0
      %965 = vmatprep.subr.mxu0 0.0
      %966 = vmatpush2.msra.mxu0 0.0
      %967 = vmatprep.mubr.f32.mxu0 0.0
      %968 = vmatmul.mubr.f32.gmra.mxu0 %v895
      %v969 = vpop.f32.mrf.mxu0
      %v970 = vadd.f32 0.0, %v969
      %v971 = vpop.f32.mrf.mxu0
      %972 = vmatprep.mubr.f32.mxu0 0.0
      %973 = vmatmul.mubr.f32.gmra.mxu0 %v898
      %v974 = vpop.f32.mrf.mxu0
      %v975 = vadd.f32 0.0, %v974
      %v976 = vpop.f32.mrf.mxu0
      %977 = vdwg.mxu0
      %v978 = vadd.f32 %v679, %v970
      %v979 = vadd.f32 %v684, %v975
      %v980 = vand.u32 2147483647, %v507
      %vm981 = vcmp.le.f32.partialorder %v980, 0.7853982
      %vm982 = vcmp.lt.s32.totalorder %v507, 0
      %v983 = vand.u32 %v507, 2139095040
      %v984 = vshrl.u32 %v983, 23
      %v985 = vsub.s32 %v984, 127
      %v986 = vand.u32 2147483647, %v507
      %v987 = vand.u32 %v986, 8388607
      %v988 = vor.u32 %v987, 8388608
      %v989 = vsub.s32 0, %v988
      %v990 = vadd.s32 %v985, 1
      %vm991 = vcmp.gt.s32.totalorder %v990, 0
      %v992 = vsel %vm991, %v990, 0
      %v993 = vshrl.u32 %v992, 5
      %v994 = vand.u32 %v992, 31
      %v995 = vsub.s32 32, %v994
      %v996 = vshrl.u32 683565275, %v995
      %v997 = vshll.u32 683565275, %v994
      %v998 = vshrl.u32 2475754826, %v995
      %v999 = vor.u32 %v997, %v998
      %v1000 = vshll.u32 2475754826, %v994
      %v1001 = vshrl.u32 2131351028, %v995
      %v1002 = vor.u32 %v1000, %v1001
      %v1003 = vshll.u32 2131351028, %v994
      %v1004 = vshrl.u32 2102212464, %v995
      %v1005 = vor.u32 %v1003, %v1004
      %v1006 = vshll.u32 2102212464, %v994
      %v1007 = vshrl.u32 920167782, %v995
      %v1008 = vor.u32 %v1006, %v1007
      %v1009 = vshll.u32 920167782, %v994
      %v1010 = vshrl.u32 1326507024, %v995
      %v1011 = vor.u32 %v1009, %v1010
      %vm1012 = vcmp.lt.s32.totalorder %v993, 1
      %vm1013 = vcmp.lt.s32.totalorder %v993, 2
      %vm1014 = vcmp.lt.s32.totalorder %v993, 3
      %vm1015 = vcmp.lt.s32.totalorder %v993, 4
      %v1016 = vsel %vm1012, %v996, %v999
      %v1017 = vsel %vm1015, %v1005, 2102212464
      %v1018 = vsel %vm1014, %v1002, %v1017
      %v1019 = vsel %vm1013, %v1016, %v1018
      %v1020 = vsel %vm1012, %v999, %v1002
      %v1021 = vsel %vm1015, %v1008, 920167782
      %v1022 = vsel %vm1014, %v1005, %v1021
      %v1023 = vsel %vm1013, %v1020, %v1022
      %v1024 = vsel %vm1012, %v1002, %v1005
      %v1025 = vsel %vm1015, %v1011, 1326507024
      %v1026 = vsel %vm1014, %v1008, %v1025
      %v1027 = vsel %vm1013, %v1024, %v1026
      %v1028 = vshll.u32 %v988, 8
      %v1029 = vmul.u32.u64.compose %v1028, %v1027
      %v1030 = vextract.low.u32 %v1029
      %v1031 = vextract.high.u32 %v1029
      %v1032 = vmul.u32.u64.compose %v1028, %v1023
      %v1033 = vextract.low.u32 %v1032
      %v1034 = vextract.high.u32 %v1032
      %v1035 = vmul.u32 %v1028, %v1019
      %v1036 = vadd.s32 %v1031, %v1033
      %vm1037 = vc.u32 %v1031, %v1033
      %v1038 = vadd.s32 %v1034, 1
      %v1039 = vsel %vm1037, %v1038, %v1034
      %v1040 = vadd.s32 %v1035, %v1039
      %v1041 = vadd.s32 %v1040, 536870912
      %v1042 = vshrl.u32 %v1041, 30
      %v1043 = vshll.u32 %v1042, 30
      %v1044 = vsub.s32 %v1040, %v1043
      %vm1045 = vcmp.lt.s32.totalorder %v1044, 0
      %v1046 = vsub.s32 0, %v1044
      %v1047 = vsel %vm1045, %v1046, %v1044
      %v1048 = vclz %v1047
      %v1049 = vsub.s32 %v1048, 2
      %vm1050 = vcmp.gt.s32.totalorder 0, %v1049
      %v1051 = vsel %vm1050, 0, %v1049
      %v1052 = vsub.s32 32, %v1051
      %v1053 = vshll.u32 %v1044, %v1051
      %v1054 = vshrl.u32 %v1036, %v1052
      %v1055 = vor.u32 %v1053, %v1054
      %v1056 = vsub.s32 4294967266, %v1051
      %v1057 = vadd.s32 %v1056, 127
      %v1058 = vshll.u32 %v1057, 23
      %v1059 = vor.u32 4788187, %v1058
      %v1060 = vand.u32 2147483647, %v1059
      %v1062 = vcvt.s32.f32 %v1055
      %v1063 = vmul.f32 %v1062, %v1060
      %v1064 = vxor.u32 %v1063, 2147483648
      %v1065 = vsel %vm982, %v1064, %v1063
      %v1066 = vsub.s32 4, %v1042
      %v1067 = vsel %vm982, %v1066, %v1042
      %v1068 = vsel %vm981, %v507, %v1065
      %v1069 = vsel %vm981, 0, %v1067
      %v1070 = vcosq.f32.pop %v1068
      %v1071 = vsinq.f32.pop %v1068
      %vm1072 = vweird.f32 %v507
      %v1073 = vadd.s32 %v1069, 3
      %v1074 = vand.u32 %v1073, 3
      %vm1075 = vcmp.lt.s32.totalorder %v1074, 2
      %vm1076 = vcmp.eq.s32.totalorder %v1074, 0
      %v1077 = vxor.u32 %v1071, 2147483648
      %v1078 = vsel %vm1076, %v1070, %v1077
      %vm1079 = vcmp.eq.s32.totalorder %v1074, 2
      %v1080 = vxor.u32 %v1070, 2147483648
      %v1081 = vsel %vm1079, %v1080, %v1071
      %v1082 = vsel %vm1075, %v1078, %v1081
      %v1083 = vsel %vm1072, nan, %v1082
      %v1084 = vand.u32 2147483647, %v508
      %vm1085 = vcmp.le.f32.partialorder %v1084, 0.7853982
      %vm1086 = vcmp.lt.s32.totalorder %v508, 0
      %v1087 = vand.u32 %v508, 2139095040
      %v1088 = vshrl.u32 %v1087, 23
      %v1089 = vsub.s32 %v1088, 127
      %v1090 = vand.u32 2147483647, %v508
      %v1091 = vand.u32 %v1090, 8388607
      %v1092 = vor.u32 %v1091, 8388608
      %v1093 = vsub.s32 0, %v1092
      %v1094 = vadd.s32 %v1089, 1
      %vm1095 = vcmp.gt.s32.totalorder %v1094, 0
      %v1096 = vsel %vm1095, %v1094, 0
      %v1097 = vshrl.u32 %v1096, 5
      %v1098 = vand.u32 %v1096, 31
      %v1099 = vsub.s32 32, %v1098
      %v1100 = vshrl.u32 683565275, %v1099
      %v1101 = vshll.u32 683565275, %v1098
      %v1102 = vshrl.u32 2475754826, %v1099
      %v1103 = vor.u32 %v1101, %v1102
      %v1104 = vshll.u32 2475754826, %v1098
      %v1105 = vshrl.u32 2131351028, %v1099
      %v1106 = vor.u32 %v1104, %v1105
      %v1107 = vshll.u32 2131351028, %v1098
      %v1108 = vshrl.u32 2102212464, %v1099
      %v1109 = vor.u32 %v1107, %v1108
      %v1110 = vshll.u32 2102212464, %v1098
      %v1111 = vshrl.u32 920167782, %v1099
      %v1112 = vor.u32 %v1110, %v1111
      %v1113 = vshll.u32 920167782, %v1098
      %v1114 = vshrl.u32 1326507024, %v1099
      %v1115 = vor.u32 %v1113, %v1114
      %vm1116 = vcmp.lt.s32.totalorder %v1097, 1
      %vm1117 = vcmp.lt.s32.totalorder %v1097, 2
      %vm1118 = vcmp.lt.s32.totalorder %v1097, 3
      %vm1119 = vcmp.lt.s32.totalorder %v1097, 4
      %v1120 = vsel %vm1116, %v1100, %v1103
      %v1121 = vsel %vm1119, %v1109, 2102212464
      %v1122 = vsel %vm1118, %v1106, %v1121
      %v1123 = vsel %vm1117, %v1120, %v1122
      %v1124 = vsel %vm1116, %v1103, %v1106
      %v1125 = vsel %vm1119, %v1112, 920167782
      %v1126 = vsel %vm1118, %v1109, %v1125
      %v1127 = vsel %vm1117, %v1124, %v1126
      %v1128 = vsel %vm1116, %v1106, %v1109
      %v1129 = vsel %vm1119, %v1115, 1326507024
      %v1130 = vsel %vm1118, %v1112, %v1129
      %v1131 = vsel %vm1117, %v1128, %v1130
      %v1132 = vshll.u32 %v1092, 8
      %v1133 = vmul.u32.u64.compose %v1132, %v1131
      %v1134 = vextract.low.u32 %v1133
      %v1135 = vextract.high.u32 %v1133
      %v1136 = vmul.u32.u64.compose %v1132, %v1127
      %v1137 = vextract.low.u32 %v1136
      %v1138 = vextract.high.u32 %v1136
      %v1139 = vmul.u32 %v1132, %v1123
      %v1140 = vadd.s32 %v1135, %v1137
      %vm1141 = vc.u32 %v1135, %v1137
      %v1142 = vadd.s32 %v1138, 1
      %v1143 = vsel %vm1141, %v1142, %v1138
      %v1144 = vadd.s32 %v1139, %v1143
      %v1145 = vadd.s32 %v1144, 536870912
      %v1146 = vshrl.u32 %v1145, 30
      %v1147 = vshll.u32 %v1146, 30
      %v1148 = vsub.s32 %v1144, %v1147
      %vm1149 = vcmp.lt.s32.totalorder %v1148, 0
      %v1150 = vsub.s32 0, %v1148
      %v1151 = vsel %vm1149, %v1150, %v1148
      %v1152 = vclz %v1151
      %v1153 = vsub.s32 %v1152, 2
      %vm1154 = vcmp.gt.s32.totalorder 0, %v1153
      %v1155 = vsel %vm1154, 0, %v1153
      %v1156 = vsub.s32 32, %v1155
      %v1157 = vshll.u32 %v1148, %v1155
      %v1158 = vshrl.u32 %v1140, %v1156
      %v1159 = vor.u32 %v1157, %v1158
      %v1160 = vsub.s32 4294967266, %v1155
      %v1161 = vadd.s32 %v1160, 127
      %v1162 = vshll.u32 %v1161, 23
      %v1163 = vor.u32 4788187, %v1162
      %v1164 = vand.u32 2147483647, %v1163
      %v1166 = vcvt.s32.f32 %v1159
      %v1167 = vmul.f32 %v1166, %v1164
      %v1168 = vxor.u32 %v1167, 2147483648
      %v1169 = vsel %vm1086, %v1168, %v1167
      %v1170 = vsub.s32 4, %v1146
      %v1171 = vsel %vm1086, %v1170, %v1146
      %v1172 = vsel %vm1085, %v508, %v1169
      %v1173 = vsel %vm1085, 0, %v1171
      %v1174 = vcosq.f32.pop %v1172
      %v1175 = vsinq.f32.pop %v1172
      %vm1176 = vweird.f32 %v508
      %v1177 = vadd.s32 %v1173, 3
      %v1178 = vand.u32 %v1177, 3
      %vm1179 = vcmp.lt.s32.totalorder %v1178, 2
      %vm1180 = vcmp.eq.s32.totalorder %v1178, 0
      %v1181 = vxor.u32 %v1175, 2147483648
      %v1182 = vsel %vm1180, %v1174, %v1181
      %vm1183 = vcmp.eq.s32.totalorder %v1178, 2
      %v1184 = vxor.u32 %v1174, 2147483648
      %v1185 = vsel %vm1183, %v1184, %v1175
      %v1186 = vsel %vm1179, %v1182, %v1185
      %v1187 = vsel %vm1176, nan, %v1186
      %v1188 = vld [vmem:[%s7] sm:$0x7]
      %v1190 = vsel %vm601, %v1083, 0
      %v1193 = vsel %vm601, %v1187, 0
      %v1196 = vsel %vm608, %v1188, 0
      %1198 = vmatprep.subr.mxu0 0.0
      %1199 = vmatpush1.msra.mxu0 0.0
      %1200 = vmatprep.subr.mxu0 0.0
      %1201 = vmatpush1.msra.mxu0 0.0
      %1202 = vmatprep.subr.mxu0 0.0
      %1203 = vmatpush1.msra.mxu0 0.0
      %1204 = vmatprep.subr.mxu0 0.0
      %1205 = vmatpush1.msra.mxu0 0.0
      %1206 = vmatprep.subr.mxu0 0.0
      %1207 = vmatpush1.msra.mxu0 0.0
      %1208 = vmatprep.subr.mxu0 0.0
      %1209 = vmatpush1.msra.mxu0 0.0
      %1210 = vmatprep.subr.mxu0 0.0
      %1211 = vmatpush1.msra.mxu0 0.0
      %1212 = vmatprep.subr.mxu0 0.0
      %1213 = vmatpush1.msra.mxu0 0.0
      %1214 = vmatprep.subr.mxu0 0.0
      %1215 = vmatpush1.msra.mxu0 0.0
      %1216 = vmatprep.subr.mxu0 0.0
      %1217 = vmatpush1.msra.mxu0 0.0
      %1218 = vmatprep.subr.mxu0 0.0
      %1219 = vmatpush1.msra.mxu0 0.0
      %1220 = vmatprep.subr.mxu0 0.0
      %1221 = vmatpush1.msra.mxu0 0.0
      %1222 = vmatprep.subr.mxu0 0.0
      %1223 = vmatpush1.msra.mxu0 0.0
      %1224 = vmatprep.subr.mxu0 0.0
      %1225 = vmatpush1.msra.mxu0 0.0
      %1226 = vmatprep.subr.mxu0 0.0
      %1227 = vmatpush1.msra.mxu0 0.0
      %1228 = vmatprep.subr.mxu0 0.0
      %1229 = vmatpush1.msra.mxu0 %v1196
      %1230 = vmatprep.subr.mxu0 0.0
      %1231 = vmatpush2.msra.mxu0 0.0
      %1232 = vmatprep.subr.mxu0 0.0
      %1233 = vmatpush2.msra.mxu0 0.0
      %1234 = vmatprep.subr.mxu0 0.0
      %1235 = vmatpush2.msra.mxu0 0.0
      %1236 = vmatprep.subr.mxu0 0.0
      %1237 = vmatpush2.msra.mxu0 0.0
      %1238 = vmatprep.subr.mxu0 0.0
      %1239 = vmatpush2.msra.mxu0 0.0
      %1240 = vmatprep.subr.mxu0 0.0
      %1241 = vmatpush2.msra.mxu0 0.0
      %1242 = vmatprep.subr.mxu0 0.0
      %1243 = vmatpush2.msra.mxu0 0.0
      %1244 = vmatprep.subr.mxu0 0.0
      %1245 = vmatpush2.msra.mxu0 0.0
      %1246 = vmatprep.subr.mxu0 0.0
      %1247 = vmatpush2.msra.mxu0 0.0
      %1248 = vmatprep.subr.mxu0 0.0
      %1249 = vmatpush2.msra.mxu0 0.0
      %1250 = vmatprep.subr.mxu0 0.0
      %1251 = vmatpush2.msra.mxu0 0.0
      %1252 = vmatprep.subr.mxu0 0.0
      %1253 = vmatpush2.msra.mxu0 0.0
      %1254 = vmatprep.subr.mxu0 0.0
      %1255 = vmatpush2.msra.mxu0 0.0
      %1256 = vmatprep.subr.mxu0 0.0
      %1257 = vmatpush2.msra.mxu0 0.0
      %1258 = vmatprep.subr.mxu0 0.0
      %1259 = vmatpush2.msra.mxu0 0.0
      %1260 = vmatprep.subr.mxu0 0.0
      %1261 = vmatpush2.msra.mxu0 0.0
      %1262 = vmatprep.mubr.f32.mxu0 0.0
      %1263 = vmatmul.mubr.f32.gmra.mxu0 %v1190
      %v1264 = vpop.f32.mrf.mxu0
      %v1265 = vadd.f32 0.0, %v1264
      %v1266 = vpop.f32.mrf.mxu0
      %1267 = vmatprep.mubr.f32.mxu0 0.0
      %1268 = vmatmul.mubr.f32.gmra.mxu0 %v1193
      %v1269 = vpop.f32.mrf.mxu0
      %v1270 = vadd.f32 0.0, %v1269
      %v1271 = vpop.f32.mrf.mxu0
      %1272 = vdwg.mxu0
      %v1273 = vadd.f32 %v978, %v1265
      %v1274 = vadd.f32 %v979, %v1270
      %v1275 = vld [vmem:[%s8] sm:$0x1]
      %v1277 = vlaneseq
      %v1278 = vshrl.u32 %v1277, 7
      %v1279 = vsub.s32 0, %v1278
      %v1280 = vrot.slane %v1275, %v1279
      %v1282 = vadd.f32 %v1273, %v1280
      %v1283 = vadd.f32 %v1274, %v1280
      %v1284 = vmax.f32 %v1282, 0.0
      %v1285 = vmax.f32 %v1283, 0.0
      %v1286 = vld [vmem:[%s9] sm:$0xff]
      %v1287 = vld [vmem:[%s9 + $0x8] sm:$0xff]
      %v1288 = vld [vmem:[%s9 + $0x10] sm:$0xff]
      %v1289 = vld [vmem:[%s9 + $0x18] sm:$0xff]
      %v1290 = vld [vmem:[%s9 + $0x20] sm:$0xff]
      %v1291 = vld [vmem:[%s9 + $0x28] sm:$0xff]
      %v1292 = vld [vmem:[%s9 + $0x30] sm:$0xff]
      %v1293 = vld [vmem:[%s9 + $0x38] sm:$0xff]
      %v1294 = vld [vmem:[%s10] sm:$0x1]
      %v1296 = vlaneseq
      %v1297 = vshrl.u32 %v1296, 7
      %v1298 = vsub.s32 0, %v1297
      %v1299 = vrot.slane %v1294, %v1298
      %vm1301 = vcmask 523264
      %v1303 = vsel %vm1301, %v1284, 0
      %v1306 = vsel %vm1301, %v1285, 0
      %1308 = vmatprep.subr.mxu0 0.0
      %1309 = vmatpush1.msra.mxu0 0.0
      %1310 = vmatprep.subr.mxu0 0.0
      %1311 = vmatpush1.msra.mxu0 0.0
      %1312 = vmatprep.subr.mxu0 0.0
      %1313 = vmatpush1.msra.mxu0 0.0
      %1314 = vmatprep.subr.mxu0 0.0
      %1315 = vmatpush1.msra.mxu0 0.0
      %1316 = vmatprep.subr.mxu0 0.0
      %1317 = vmatpush1.msra.mxu0 0.0
      %1318 = vmatprep.subr.mxu0 0.0
      %1319 = vmatpush1.msra.mxu0 0.0
      %1320 = vmatprep.subr.mxu0 0.0
      %1321 = vmatpush1.msra.mxu0 0.0
      %1322 = vmatprep.subr.mxu0 0.0
      %1323 = vmatpush1.msra.mxu0 0.0
      %1324 = vmatprep.subr.mxu0 0.0
      %1325 = vmatpush1.msra.mxu0 %v1293
      %1326 = vmatprep.subr.mxu0 0.0
      %1327 = vmatpush1.msra.mxu0 %v1292
      %1328 = vmatprep.subr.mxu0 0.0
      %1329 = vmatpush1.msra.mxu0 %v1291
      %1330 = vmatprep.subr.mxu0 0.0
      %1331 = vmatpush1.msra.mxu0 %v1290
      %1332 = vmatprep.subr.mxu0 0.0
      %1333 = vmatpush1.msra.mxu0 %v1289
      %1334 = vmatprep.subr.mxu0 0.0
      %1335 = vmatpush1.msra.mxu0 %v1288
      %1336 = vmatprep.subr.mxu0 0.0
      %1337 = vmatpush1.msra.mxu0 %v1287
      %1338 = vmatprep.subr.mxu0 0.0
      %1339 = vmatpush1.msra.mxu0 %v1286
      %1340 = vmatprep.subr.mxu0 0.0
      %1341 = vmatpush2.msra.mxu0 0.0
      %1342 = vmatprep.subr.mxu0 0.0
      %1343 = vmatpush2.msra.mxu0 0.0
      %1344 = vmatprep.subr.mxu0 0.0
      %1345 = vmatpush2.msra.mxu0 0.0
      %1346 = vmatprep.subr.mxu0 0.0
      %1347 = vmatpush2.msra.mxu0 0.0
      %1348 = vmatprep.subr.mxu0 0.0
      %1349 = vmatpush2.msra.mxu0 0.0
      %1350 = vmatprep.subr.mxu0 0.0
      %1351 = vmatpush2.msra.mxu0 0.0
      %1352 = vmatprep.subr.mxu0 0.0
      %1353 = vmatpush2.msra.mxu0 0.0
      %1354 = vmatprep.subr.mxu0 0.0
      %1355 = vmatpush2.msra.mxu0 0.0
      %1356 = vmatprep.subr.mxu0 0.0
      %1357 = vmatpush2.msra.mxu0 0.0
      %1358 = vmatprep.subr.mxu0 0.0
      %1359 = vmatpush2.msra.mxu0 0.0
      %1360 = vmatprep.subr.mxu0 0.0
      %1361 = vmatpush2.msra.mxu0 0.0
      %1362 = vmatprep.subr.mxu0 0.0
      %1363 = vmatpush2.msra.mxu0 0.0
      %1364 = vmatprep.subr.mxu0 0.0
      %1365 = vmatpush2.msra.mxu0 0.0
      %1366 = vmatprep.subr.mxu0 0.0
      %1367 = vmatpush2.msra.mxu0 0.0
      %1368 = vmatprep.subr.mxu0 0.0
      %1369 = vmatpush2.msra.mxu0 0.0
      %1370 = vmatprep.subr.mxu0 0.0
      %1371 = vmatpush2.msra.mxu0 0.0
      %1372 = vmatprep.mubr.f32.mxu0 0.0
      %1373 = vmatmul.mubr.f32.gmra.mxu0 %v1303
      %v1374 = vpop.f32.mrf.mxu0
      %v1375 = vadd.f32 %v1299, %v1374
      %v1376 = vpop.f32.mrf.mxu0
      %1377 = vmatprep.mubr.f32.mxu0 0.0
      %1378 = vmatmul.mubr.f32.gmra.mxu0 %v1306
      %v1379 = vpop.f32.mrf.mxu0
      %v1380 = vadd.f32 %v1299, %v1379
      %v1381 = vpop.f32.mrf.mxu0
      %1382 = vdwg.mxu0
      %v1383 = vmax.f32 %v1375, 0.0
      %v1384 = vmax.f32 %v1380, 0.0
      %v1385 = vld [vmem:[%s11] sm:$0xff]
      %v1386 = vld [vmem:[%s11 + $0x8] sm:$0xff]
      %v1387 = vld [vmem:[%s11 + $0x10] sm:$0xff]
      %v1388 = vld [vmem:[%s11 + $0x18] sm:$0xff]
      %v1389 = vld [vmem:[%s11 + $0x20] sm:$0xff]
      %v1390 = vld [vmem:[%s11 + $0x28] sm:$0xff]
      %v1391 = vld [vmem:[%s11 + $0x30] sm:$0xff]
      %v1392 = vld [vmem:[%s11 + $0x38] sm:$0xff]
      %v1393 = vld [vmem:[%s12] sm:$0x1]
      %v1395 = vlaneseq
      %v1396 = vshrl.u32 %v1395, 7
      %v1397 = vsub.s32 0, %v1396
      %v1398 = vrot.slane %v1393, %v1397
      %v1401 = vsel %vm1301, %v1383, 0
      %v1404 = vsel %vm1301, %v1384, 0
      %1406 = vmatprep.subr.mxu0 0.0
      %1407 = vmatpush1.msra.mxu0 0.0
      %1408 = vmatprep.subr.mxu0 0.0
      %1409 = vmatpush1.msra.mxu0 0.0
      %1410 = vmatprep.subr.mxu0 0.0
      %1411 = vmatpush1.msra.mxu0 0.0
      %1412 = vmatprep.subr.mxu0 0.0
      %1413 = vmatpush1.msra.mxu0 0.0
      %1414 = vmatprep.subr.mxu0 0.0
      %1415 = vmatpush1.msra.mxu0 0.0
      %1416 = vmatprep.subr.mxu0 0.0
      %1417 = vmatpush1.msra.mxu0 0.0
      %1418 = vmatprep.subr.mxu0 0.0
      %1419 = vmatpush1.msra.mxu0 0.0
      %1420 = vmatprep.subr.mxu0 0.0
      %1421 = vmatpush1.msra.mxu0 0.0
      %1422 = vmatprep.subr.mxu0 0.0
      %1423 = vmatpush1.msra.mxu0 %v1392
      %1424 = vmatprep.subr.mxu0 0.0
      %1425 = vmatpush1.msra.mxu0 %v1391
      %1426 = vmatprep.subr.mxu0 0.0
      %1427 = vmatpush1.msra.mxu0 %v1390
      %1428 = vmatprep.subr.mxu0 0.0
      %1429 = vmatpush1.msra.mxu0 %v1389
      %1430 = vmatprep.subr.mxu0 0.0
      %1431 = vmatpush1.msra.mxu0 %v1388
      %1432 = vmatprep.subr.mxu0 0.0
      %1433 = vmatpush1.msra.mxu0 %v1387
      %1434 = vmatprep.subr.mxu0 0.0
      %1435 = vmatpush1.msra.mxu0 %v1386
      %1436 = vmatprep.subr.mxu0 0.0
      %1437 = vmatpush1.msra.mxu0 %v1385
      %1438 = vmatprep.subr.mxu0 0.0
      %1439 = vmatpush2.msra.mxu0 0.0
      %1440 = vmatprep.subr.mxu0 0.0
      %1441 = vmatpush2.msra.mxu0 0.0
      %1442 = vmatprep.subr.mxu0 0.0
      %1443 = vmatpush2.msra.mxu0 0.0
      %1444 = vmatprep.subr.mxu0 0.0
      %1445 = vmatpush2.msra.mxu0 0.0
      %1446 = vmatprep.subr.mxu0 0.0
      %1447 = vmatpush2.msra.mxu0 0.0
      %1448 = vmatprep.subr.mxu0 0.0
      %1449 = vmatpush2.msra.mxu0 0.0
      %1450 = vmatprep.subr.mxu0 0.0
      %1451 = vmatpush2.msra.mxu0 0.0
      %1452 = vmatprep.subr.mxu0 0.0
      %1453 = vmatpush2.msra.mxu0 0.0
      %1454 = vmatprep.subr.mxu0 0.0
      %1455 = vmatpush2.msra.mxu0 0.0
      %1456 = vmatprep.subr.mxu0 0.0
      %1457 = vmatpush2.msra.mxu0 0.0
      %1458 = vmatprep.subr.mxu0 0.0
      %1459 = vmatpush2.msra.mxu0 0.0
      %1460 = vmatprep.subr.mxu0 0.0
      %1461 = vmatpush2.msra.mxu0 0.0
      %1462 = vmatprep.subr.mxu0 0.0
      %1463 = vmatpush2.msra.mxu0 0.0
      %1464 = vmatprep.subr.mxu0 0.0
      %1465 = vmatpush2.msra.mxu0 0.0
      %1466 = vmatprep.subr.mxu0 0.0
      %1467 = vmatpush2.msra.mxu0 0.0
      %1468 = vmatprep.subr.mxu0 0.0
      %1469 = vmatpush2.msra.mxu0 0.0
      %1470 = vmatprep.mubr.f32.mxu0 0.0
      %1471 = vmatmul.mubr.f32.gmra.mxu0 %v1401
      %v1472 = vpop.f32.mrf.mxu0
      %v1473 = vadd.f32 %v1398, %v1472
      %v1474 = vpop.f32.mrf.mxu0
      %1475 = vmatprep.mubr.f32.mxu0 0.0
      %1476 = vmatmul.mubr.f32.gmra.mxu0 %v1404
      %v1477 = vpop.f32.mrf.mxu0
      %v1478 = vadd.f32 %v1398, %v1477
      %v1479 = vpop.f32.mrf.mxu0
      %1480 = vdwg.mxu0
      %1481 = vst.msk [vmem:[%s486] sm:$0xff] %vm601, %v1473
      %1482 = vst.msk [vmem:[%s486 + $0x8] sm:$0xff] %vm601, %v1478
      %s1483 = smul.u32 2, %s24
      %p1484 = scmp.lt.s32.totalorder %s1483, 7
      %s1485 = scalar_select %p1484, %s1483, 7
      %s1486 = smul.addr %s1485, 8
      %s1487 = scalar_lea.vmem %s13, %s1486
      // Predicated region
      $region73: #{tpu_custom_call.1} parent=71 // pred_check
        %p1488 = pneg %p330
      $region74: #{tpu_custom_call.1} parent=71 // pred_check_branch
        %1490 = sbr.rel (%p1488) target = $region76
      $region75: #{tpu_custom_call.1} parent=71 // pred_region
        %s1491 = smul.u32 2, %s24
      $region76: #{tpu_custom_call.1} parent=71 // pred_fallthru
        _
    $region72: #{tpu_custom_call.1} parent=5 // pred_fallthru
      _
    %p1492 = scmp.le.s32.totalorder 2, %s19
    // Predicated region
    $region77: #{tpu_custom_call.1} parent=5 // pred_check
      %p1493 = pneg %p1492
    $region78: #{tpu_custom_call.1} parent=5 // pred_check_branch
      %1495 = sbr.rel (%p1493) target = $region80
    $region79: #{tpu_custom_call.1} parent=5 // pred_region
      %s1496 = ssub.s32 %s19, 2
      // Predicated region
      $region81: #{tpu_custom_call.1} parent=79 // pred_check
        %p1497 = pneg %p336
      $region82: #{tpu_custom_call.1} parent=79 // pred_check_branch
        %1499 = sbr.rel (%p1497) target = $region84
      $region83: #{tpu_custom_call.1} parent=79 // pred_region
        %s1500 = smul.u32 2, %s25
        %p1501 = scmp.lt.s32.totalorder %s1500, 7
        %s1502 = scalar_select %p1501, %s1500, 7
        %s1503 = smul.addr %s1502, 8
        %s1504 = scalar_lea.vmem %s13, %s1503
      $region84: #{tpu_custom_call.1} parent=79 // pred_fallthru
        _
    $region80: #{tpu_custom_call.1} parent=5 // pred_fallthru
      _
  $region6: #{tpu_custom_call.1} parent=0 // loop_footer
    %s23 = sadd.s32 1, %s19
  $region7: #{tpu_custom_call.1} parent=0 // loop_footer_branch
    %18 = sbr.rel target = $region3
  $region8: #{tpu_custom_call.1} parent=0 // loop_exit
    _

</llo_original>
